<compile_context>
chip_gen: v5e
topology: v5e:2x2
jax: 0.10.0
libtpu: 0.0.40
codegen_flags: <defaults>
</compile_context>

<pallas_src>
import jax
import jax.numpy as jnp
import numpy as np
from jax.experimental import pallas as pl
from jax.experimental.pallas import tpu as pltpu

_EPS = 1e-5


def _tile_m(m):
    """Largest power-of-two row tile <= 512 that divides m (m must be a multiple of 8)."""
    t = 8
    while t < 512 and m % (2 * t) == 0:
        t *= 2
    return t


# ------------------------------ Pallas kernels -------------------------------

def _dual_1x1_stats_kernel(x_ref, w1_ref, wsc_ref,
                           y1_ref, ysc_ref, s1_ref, q1_ref, ssc_ref, qsc_ref):
    """Two 1x1 convs (main F1 + shortcut F3) sharing one activation read, plus
    per-tile sum / sum-of-squares for the following train-mode BatchNorms."""
    x = x_ref[...]
    y1 = jnp.dot(x, w1_ref[...], preferred_element_type=jnp.float32)
    ysc = jnp.dot(x, wsc_ref[...], preferred_element_type=jnp.float32)
    y1_ref[...] = y1
    ysc_ref[...] = ysc
    s1_ref[...] = jnp.sum(y1, axis=0, keepdims=True)[None]
    q1_ref[...] = jnp.sum(y1 * y1, axis=0, keepdims=True)[None]
    ssc_ref[...] = jnp.sum(ysc, axis=0, keepdims=True)[None]
    qsc_ref[...] = jnp.sum(ysc * ysc, axis=0, keepdims=True)[None]


def _bn_relu_conv_fxf_stats_kernel(yrow_ref, s_ref, t_ref, w_ref,
                                   o_ref, sum_ref, sq_ref):
    """grid = (N, Ho, f).  For one output image row (n, h) and vertical tap dh:
    BN+ReLU prologue on the (zero-padded, pre-BN) input row, tap-accumulated
    f x f conv into the resident output block, per-row BN stats at the last tap."""
    f = w_ref.shape[1]
    Wp = yrow_ref.shape[2]
    F1 = yrow_ref.shape[3]
    Wo, F2 = o_ref.shape
    pad = (Wp - Wo) // 2
    dh = pl.program_id(2)

    @pl.when(dh == 0)
    def _init():
        o_ref[...] = jnp.zeros_like(o_ref)

    # padded-input row index; rows 0 and Hp-1 are pure zero padding -> skip them
    row = pl.program_id(1) + dh
    is_interior = jnp.logical_and(row >= pad, row < pl.num_programs(1) + pad)

    @pl.when(is_interior)
    def _accumulate():
        wpos = jax.lax.broadcasted_iota(jnp.int32, (Wo, F1), 0)
        contrib = jnp.zeros((Wo, F2), jnp.float32)
        for dw in range(f):                                   # static tap unroll
            seg = yrow_ref[0, 0, dw:dw + Wo, :]               # (Wo, F1), pre-BN
            a = jnp.maximum(seg * s_ref[...] + t_ref[...], 0.0)   # fused BN+ReLU
            src = wpos + dw                                   # source W position
            a = jnp.where(jnp.logical_and(src >= pad, src < Wp - pad), a, 0.0)
            contrib = contrib + jnp.dot(a, w_ref[0, dw],
                                        preferred_element_type=jnp.float32)
        o_ref[...] += contrib

    @pl.when(dh == f - 1)
    def _stats():
        y = o_ref[...]
        sum_ref[...] = jnp.sum(y, axis=0, keepdims=True)[None]
        sq_ref[...] = jnp.sum(y * y, axis=0, keepdims=True)[None]


def _bn_relu_1x1_stats_kernel(y_ref, s_ref, t_ref, w_ref, o_ref, sum_ref, sq_ref):
    """BN+ReLU prologue fused into the final 1x1 conv, plus stats of its output."""
    a = jnp.maximum(y_ref[...] * s_ref[...] + t_ref[...], 0.0)
    y = jnp.dot(a, w_ref[...], preferred_element_type=jnp.float32)
    o_ref[...] = y
    sum_ref[...] = jnp.sum(y, axis=0, keepdims=True)[None]
    sq_ref[...] = jnp.sum(y * y, axis=0, keepdims=True)[None]


def _bn_add_bn_relu_kernel(a_ref, sa_ref, ta_ref, b_ref, sb_ref, tb_ref, o_ref):
    """relu( BN(main) + BN(shortcut) ), both BNs as precomputed scale/shift."""
    y = (a_ref[...] * sa_ref[...] + ta_ref[...]
         + b_ref[...] * sb_ref[...] + tb_ref[...])
    o_ref[...] = jnp.maximum(y, 0.0)


# --------------------------------- JAX glue ----------------------------------

def _scale_shift(sum_p, sq_p, count, gamma, beta, eps=_EPS):
    """Finalize train-mode BN (biased var) from fused partial sums -> scale/shift."""
    s = jnp.sum(sum_p, axis=(0, 1))
    q = jnp.sum(sq_p, axis=(0, 1))
    mean = s / count
    var = jnp.maximum(q / count - mean * mean, 0.0)
    scale = gamma * jax.lax.rsqrt(var + eps)
    shift = beta - mean * scale
    return scale.reshape(1, -1), shift.reshape(1, -1)


def conv_block_forward(x_nchw, p, s, f):
    pad = 1                                # nn.Conv2d(..., padding=True) == padding=1
    assert f == 2 * pad + 1, "residual add requires the fxf conv to preserve (H, W)"

    x = jnp.transpose(x_nchw, (0, 2, 3, 1)).astype(jnp.float32)   # NCHW -> NHWC
    N, H, W, Cin = x.shape
    F1 = p["w1"].shape[1]
    F2 = p["w2"].shape[3]
    F3 = p["w3"].shape[1]

    # stride-s spatial subsample shared by both 1x1 stride-s convs, as a 2-D slab.
    # TODO(synk): fold the NCHW->NHWC transpose + stride-s subsample into kernel A's
    # index_map instead of this (single, small) XLA gather.
    xs = x[:, ::s, ::s, :]
    Ho, Wo = xs.shape[1], xs.shape[2]
    M = N * Ho * Wo
    assert Wo % 8 == 0 and M % 8 == 0, "row tiling assumes sublane-aligned rows"
    xs2d = xs.reshape(M, Cin)

    TM = _tile_m(M)
    mt = M // TM
    par1 = pltpu.CompilerParams(dimension_semantics=("parallel",))

    # ---- kernel A: fused dual 1x1 conv (main + shortcut) + BN partial stats ----
    y1, ysc, s1p, q1p, sscp, qscp = pl.pallas_call(
        _dual_1x1_stats_kernel,
        out_shape=(jax.ShapeDtypeStruct((M, F1), jnp.float32),
                   jax.ShapeDtypeStruct((M, F3), jnp.float32),
                   jax.ShapeDtypeStruct((mt, 1, F1), jnp.float32),
                   jax.ShapeDtypeStruct((mt, 1, F1), jnp.float32),
                   jax.ShapeDtypeStruct((mt, 1, F3), jnp.float32),
                   jax.ShapeDtypeStruct((mt, 1, F3), jnp.float32)),
        grid=(mt,),
        in_specs=[pl.BlockSpec((TM, Cin), lambda i: (i, 0)),
                  pl.BlockSpec((Cin, F1), lambda i: (0, 0)),
                  pl.BlockSpec((Cin, F3), lambda i: (0, 0))],
        out_specs=(pl.BlockSpec((TM, F1), lambda i: (i, 0)),
                   pl.BlockSpec((TM, F3), lambda i: (i, 0)),
                   pl.BlockSpec((1, 1, F1), lambda i: (i, 0, 0)),
                   pl.BlockSpec((1, 1, F1), lambda i: (i, 0, 0)),
                   pl.BlockSpec((1, 1, F3), lambda i: (i, 0, 0)),
                   pl.BlockSpec((1, 1, F3), lambda i: (i, 0, 0))),
        compiler_params=par1,
    )(xs2d, p["w1"], p["wsc"])

    sc1, sh1 = _scale_shift(s1p, q1p, M, p["g1"], p["be1"])

    # ---- kernel B: BN1+ReLU prologue -> tap-accumulated f x f conv + BN2 stats ----
    # Pre-BN y1 is zero-padded spatially (one small copy); the pad positions are
    # re-zeroed after the in-kernel BN+ReLU (column mask / skipped pad rows), so no
    # separate activation pass and no f*f x im2col buffer is materialized in HBM.
    Wp = Wo + 2 * pad
    y1p = jnp.pad(y1.reshape(N, Ho, Wo, F1),
                  ((0, 0), (pad, pad), (pad, pad), (0, 0)))

    y2, s2p, q2p = pl.pallas_call(
        _bn_relu_conv_fxf_stats_kernel,
        out_shape=(jax.ShapeDtypeStruct((M, F2), jnp.float32),
                   jax.ShapeDtypeStruct((N * Ho, 1, F2), jnp.float32),
                   jax.ShapeDtypeStruct((N * Ho, 1, F2), jnp.float32)),
        grid=(N, Ho, f),
        in_specs=[pl.BlockSpec((1, 1, Wp, F1), lambda n, h, dh: (n, h + dh, 0, 0)),
                  pl.BlockSpec((1, F1), lambda n, h, dh: (0, 0)),
                  pl.BlockSpec((1, F1), lambda n, h, dh: (0, 0)),
                  pl.BlockSpec((1, f, F1, F2), lambda n, h, dh: (dh, 0, 0, 0))],
        out_specs=(pl.BlockSpec((Wo, F2), lambda n, h, dh: (n * Ho + h, 0)),
                   pl.BlockSpec((1, 1, F2), lambda n, h, dh: (n * Ho + h, 0, 0)),
                   pl.BlockSpec((1, 1, F2), lambda n, h, dh: (n * Ho + h, 0, 0))),
        compiler_params=pltpu.CompilerParams(
            dimension_semantics=("parallel", "parallel", "arbitrary")),
    )(y1p, sc1, sh1, p["w2"])

    sc2, sh2 = _scale_shift(s2p, q2p, M, p["g2"], p["be2"])

    # ---- kernel C: BN2+ReLU prologue -> final 1x1 conv + BN3 partial stats ----
    y3, s3p, q3p = pl.pallas_call(
        _bn_relu_1x1_stats_kernel,
        out_shape=(jax.ShapeDtypeStruct((M, F3), jnp.float32),
                   jax.ShapeDtypeStruct((mt, 1, F3), jnp.float32),
                   jax.ShapeDtypeStruct((mt, 1, F3), jnp.float32)),
        grid=(mt,),
        in_specs=[pl.BlockSpec((TM, F2), lambda i: (i, 0)),
                  pl.BlockSpec((1, F2), lambda i: (0, 0)),
                  pl.BlockSpec((1, F2), lambda i: (0, 0)),
                  pl.BlockSpec((F2, F3), lambda i: (0, 0))],
        out_specs=(pl.BlockSpec((TM, F3), lambda i: (i, 0)),
                   pl.BlockSpec((1, 1, F3), lambda i: (i, 0, 0)),
                   pl.BlockSpec((1, 1, F3), lambda i: (i, 0, 0))),
        compiler_params=par1,
    )(y2, sc2, sh2, p["w3"])

    sc3, sh3 = _scale_shift(s3p, q3p, M, p["g3"], p["be3"])
    scc, shc = _scale_shift(sscp, qscp, M, p["gsc"], p["besc"])

    # ---- kernel D: fused BN3 + BN_shortcut + residual add + ReLU ----
    out2d = pl.pallas_call(
        _bn_add_bn_relu_kernel,
        out_shape=jax.ShapeDtypeStruct((M, F3), jnp.float32),
        grid=(mt,),
        in_specs=[pl.BlockSpec((TM, F3), lambda i: (i, 0)),
                  pl.BlockSpec((1, F3), lambda i: (0, 0)),
                  pl.BlockSpec((1, F3), lambda i: (0, 0)),
                  pl.BlockSpec((TM, F3), lambda i: (i, 0)),
                  pl.BlockSpec((1, F3), lambda i: (0, 0)),
                  pl.BlockSpec((1, F3), lambda i: (0, 0))],
        out_specs=pl.BlockSpec((TM, F3), lambda i: (i, 0)),
        compiler_params=par1,
    )(y3, sc3, sh3, ysc, scc, shc)

    out = out2d.reshape(N, Ho, Wo, F3)
    return jnp.transpose(out, (0, 3, 1, 2))          # NHWC -> NCHW


# ------------------------ deterministic parameter init ----------------------

def init_params(key, cin, f, filters):
    F1, F2, F3 = filters
    ks = jax.random.split(key, 16)

    def w(k, shape, scale=0.1):
        return scale * jax.random.normal(k, shape, dtype=jnp.float32)

    return {
        # conv weights stored matmul-ready; w2 uses HWIO layout (f, f, F1, F2)
        "w1": w(ks[0], (cin, F1)),            "b1": w(ks[1], (F1,)),
        "w2": w(ks[2], (f, f, F1, F2)),        "b2": w(ks[3], (F2,)),
        "w3": w(ks[4], (F2, F3)),              "b3": w(ks[5], (F3,)),
        "wsc": w(ks[6], (cin, F3)),            "bsc": w(ks[7], (F3,)),
        # BatchNorm affine params (nontrivial, deterministic)
        "g1": 1.0 + w(ks[8], (F1,)),   "be1": w(ks[9], (F1,)),
        "g2": 1.0 + w(ks[10], (F2,)),  "be2": w(ks[11], (F2,)),
        "g3": 1.0 + w(ks[12], (F3,)),  "be3": w(ks[13], (F3,)),
        "gsc": 1.0 + w(ks[14], (F3,)), "besc": w(ks[15], (F3,)),
    }


# ------------------------------ pure-JAX reference ---------------------------

def reference(x_nchw, p, s, f):
    """Mirrors the PyTorch module exactly (biases included; train-mode BN)."""
    x = jnp.transpose(x_nchw, (0, 2, 3, 1)).astype(jnp.float32)

    def bn(y, g, b, eps=_EPS):
        m = jnp.mean(y, axis=(0, 1, 2), keepdims=True)
        v = jnp.mean((y - m) ** 2, axis=(0, 1, 2), keepdims=True)
        return (y - m) / jnp.sqrt(v + eps) * g + b

    relu = jax.nn.relu
    xs = x[:, ::s, ::s, :]
    a1 = relu(bn(xs @ p["w1"] + p["b1"], p["g1"], p["be1"]))
    y2 = jax.lax.conv_general_dilated(
        a1, p["w2"], window_strides=(1, 1), padding=[(1, 1), (1, 1)],
        dimension_numbers=("NHWC", "HWIO", "NHWC")) + p["b2"]
    a2 = relu(bn(y2, p["g2"], p["be2"]))
    y3 = bn(a2 @ p["w3"] + p["b3"], p["g3"], p["be3"])
    ysc = bn(xs @ p["wsc"] + p["bsc"], p["gsc"], p["besc"])
    out = relu(y3 + ysc)
    return jnp.transpose(out, (0, 3, 1, 2))


# ----------------------------------- main ------------------------------------

if __name__ == "__main__":
    in_channel, f, filters, s = 4, 3, (4, 6, 8), 2
    kx, kp = jax.random.split(jax.random.PRNGKey(0))
    x = jax.random.normal(kx, (2, in_channel, 16, 16), dtype=jnp.float32)
    params = init_params(kp, in_channel, f, filters)

    fwd = jax.jit(conv_block_forward, static_argnums=(2, 3))
    out = jax.block_until_ready(fwd(x, params, s, f))

    ref = jax.block_until_ready(reference(x, params, s, f))
    np.testing.assert_allclose(np.asarray(out), np.asarray(ref),
                               rtol=1e-3, atol=1e-3)
    assert out.shape == (2, filters[2], 16 // s, 16 // s)
    print("KERNEL_OK")
</pallas_src>

<mosaic_0001>
module attributes {stable_mosaic.version = 11 : i64} {
  func.func @_dual_1x1_stats_kernel(%arg0: i32, %arg1: memref<128x4xf32, #tpu.memory_space<vmem>>, %arg2: memref<4x4xf32, #tpu.memory_space<vmem>>, %arg3: memref<4x8xf32, #tpu.memory_space<vmem>>, %arg4: memref<128x4xf32, #tpu.memory_space<vmem>>, %arg5: memref<128x8xf32, #tpu.memory_space<vmem>>, %arg6: memref<1x1x4xf32, #tpu.memory_space<vmem>>, %arg7: memref<1x1x4xf32, #tpu.memory_space<vmem>>, %arg8: memref<1x1x8xf32, #tpu.memory_space<vmem>>, %arg9: memref<1x1x8xf32, #tpu.memory_space<vmem>>) attributes {dimension_semantics = [#tpu.dimension_semantics<parallel>], iteration_bounds = array<i64: 1>, scalar_prefetch = 0 : i64, scratch_operands = 0 : i64, tpu.core_type = #tpu.core_type<tc>, window_params = [{transform_indices = @transform_0, window_bounds = array<i64: 128, 4>}, {pipeline_mode = #tpu.pipeline_mode<synchronous>, transform_indices = @transform_1, window_bounds = array<i64: 4, 4>}, {pipeline_mode = #tpu.pipeline_mode<synchronous>, transform_indices = @transform_2, window_bounds = array<i64: 4, 8>}, {transform_indices = @transform_3, window_bounds = array<i64: 128, 4>}, {transform_indices = @transform_4, window_bounds = array<i64: 128, 8>}, {transform_indices = @transform_5, window_bounds = array<i64: 1, 1, 4>}, {transform_indices = @transform_6, window_bounds = array<i64: 1, 1, 4>}, {transform_indices = @transform_7, window_bounds = array<i64: 1, 1, 8>}, {transform_indices = @transform_8, window_bounds = array<i64: 1, 1, 8>}]} {
    %c0 = arith.constant 0 : index
    %c0_0 = arith.constant 0 : index
    %0 = vector.load %arg1[%c0, %c0_0] : memref<128x4xf32, #tpu.memory_space<vmem>>, vector<128x4xf32>
    %c0_1 = arith.constant 0 : index
    %c0_2 = arith.constant 0 : index
    %1 = vector.load %arg2[%c0_1, %c0_2] : memref<4x4xf32, #tpu.memory_space<vmem>>, vector<4x4xf32>
    %cst = arith.constant dense<0.000000e+00> : vector<128x4xf32>
    %2 = tpu.matmul %0, %1, %cst {dimension_numbers = #tpu.dot_dimension_numbers<[1], [0], [0], [1], [0, 0, 1, 1], [], []>} : vector<128x4xf32>, vector<4x4xf32>, vector<128x4xf32> -> vector<128x4xf32>
    %c0_3 = arith.constant 0 : index
    %c0_4 = arith.constant 0 : index
    %3 = vector.load %arg3[%c0_3, %c0_4] : memref<4x8xf32, #tpu.memory_space<vmem>>, vector<4x8xf32>
    %cst_5 = arith.constant dense<0.000000e+00> : vector<128x8xf32>
    %4 = tpu.matmul %0, %3, %cst_5 {dimension_numbers = #tpu.dot_dimension_numbers<[1], [0], [0], [1], [0, 0, 1, 1], [], []>} : vector<128x4xf32>, vector<4x8xf32>, vector<128x8xf32> -> vector<128x8xf32>
    %c0_6 = arith.constant 0 : index
    %c0_7 = arith.constant 0 : index
    %5 = vector.load %arg4[%c0_6, %c0_7] : memref<128x4xf32, #tpu.memory_space<vmem>>, vector<128x4xf32>
    tpu.vector_store %arg4[%c0_6, %c0_7], %2 {strides = array<i32>} : memref<128x4xf32, #tpu.memory_space<vmem>>, vector<128x4xf32>,
    %c0_8 = arith.constant 0 : index
    %c0_9 = arith.constant 0 : index
    %6 = vector.load %arg5[%c0_8, %c0_9] : memref<128x8xf32, #tpu.memory_space<vmem>>, vector<128x8xf32>
    tpu.vector_store %arg5[%c0_8, %c0_9], %4 {strides = array<i32>} : memref<128x8xf32, #tpu.memory_space<vmem>>, vector<128x8xf32>,
    %cst_10 = arith.constant dense<0.000000e+00> : vector<4xf32>
    %7 = vector.multi_reduction <add>, %2, %cst_10 [0] : vector<128x4xf32> to vector<4xf32>
    %8 = vector.shape_cast %7 : vector<4xf32> to vector<1x4xf32>
    %9 = vector.shape_cast %8 : vector<1x4xf32> to vector<1x1x4xf32>
    %c0_11 = arith.constant 0 : index
    %c0_12 = arith.constant 0 : index
    %c0_13 = arith.constant 0 : index
    %10 = vector.load %arg6[%c0_11, %c0_12, %c0_13] : memref<1x1x4xf32, #tpu.memory_space<vmem>>, vector<1x1x4xf32>
    tpu.vector_store %arg6[%c0_11, %c0_12, %c0_13], %9 {strides = array<i32>} : memref<1x1x4xf32, #tpu.memory_space<vmem>>, vector<1x1x4xf32>,
    %11 = arith.mulf %2, %2 : vector<128x4xf32>
    %cst_14 = arith.constant dense<0.000000e+00> : vector<4xf32>
    %12 = vector.multi_reduction <add>, %11, %cst_14 [0] : vector<128x4xf32> to vector<4xf32>
    %13 = vector.shape_cast %12 : vector<4xf32> to vector<1x4xf32>
    %14 = vector.shape_cast %13 : vector<1x4xf32> to vector<1x1x4xf32>
    %c0_15 = arith.constant 0 : index
    %c0_16 = arith.constant 0 : index
    %c0_17 = arith.constant 0 : index
    %15 = vector.load %arg7[%c0_15, %c0_16, %c0_17] : memref<1x1x4xf32, #tpu.memory_space<vmem>>, vector<1x1x4xf32>
    tpu.vector_store %arg7[%c0_15, %c0_16, %c0_17], %14 {strides = array<i32>} : memref<1x1x4xf32, #tpu.memory_space<vmem>>, vector<1x1x4xf32>,
    %cst_18 = arith.constant dense<0.000000e+00> : vector<8xf32>
    %16 = vector.multi_reduction <add>, %4, %cst_18 [0] : vector<128x8xf32> to vector<8xf32>
    %17 = vector.shape_cast %16 : vector<8xf32> to vector<1x8xf32>
    %18 = vector.shape_cast %17 : vector<1x8xf32> to vector<1x1x8xf32>
    %c0_19 = arith.constant 0 : index
    %c0_20 = arith.constant 0 : index
    %c0_21 = arith.constant 0 : index
    %19 = vector.load %arg8[%c0_19, %c0_20, %c0_21] : memref<1x1x8xf32, #tpu.memory_space<vmem>>, vector<1x1x8xf32>
    tpu.vector_store %arg8[%c0_19, %c0_20, %c0_21], %18 {strides = array<i32>} : memref<1x1x8xf32, #tpu.memory_space<vmem>>, vector<1x1x8xf32>,
    %20 = arith.mulf %4, %4 : vector<128x8xf32>
    %cst_22 = arith.constant dense<0.000000e+00> : vector<8xf32>
    %21 = vector.multi_reduction <add>, %20, %cst_22 [0] : vector<128x8xf32> to vector<8xf32>
    %22 = vector.shape_cast %21 : vector<8xf32> to vector<1x8xf32>
    %23 = vector.shape_cast %22 : vector<1x8xf32> to vector<1x1x8xf32>
    %c0_23 = arith.constant 0 : index
    %c0_24 = arith.constant 0 : index
    %c0_25 = arith.constant 0 : index
    %24 = vector.load %arg9[%c0_23, %c0_24, %c0_25] : memref<1x1x8xf32, #tpu.memory_space<vmem>>, vector<1x1x8xf32>
    tpu.vector_store %arg9[%c0_23, %c0_24, %c0_25], %23 {strides = array<i32>} : memref<1x1x8xf32, #tpu.memory_space<vmem>>, vector<1x1x8xf32>,
    return
  }
  func.func @transform_0(%arg0: i32) -> (i32, i32) {
    %c0_i32 = arith.constant 0 : i32
    %c0_i32_0 = arith.constant 0 : i32
    return %arg0, %c0_i32 : i32, i32
  }
  func.func @transform_1(%arg0: i32) -> (i32, i32) {
    %c0_i32 = arith.constant 0 : i32
    %c0_i32_0 = arith.constant 0 : i32
    %c0_i32_1 = arith.constant 0 : i32
    return %c0_i32, %c0_i32_0 : i32, i32
  }
  func.func @transform_2(%arg0: i32) -> (i32, i32) {
    %c0_i32 = arith.constant 0 : i32
    %c0_i32_0 = arith.constant 0 : i32
    %c0_i32_1 = arith.constant 0 : i32
    return %c0_i32, %c0_i32_0 : i32, i32
  }
  func.func @transform_3(%arg0: i32) -> (i32, i32) {
    %c0_i32 = arith.constant 0 : i32
    %c0_i32_0 = arith.constant 0 : i32
    return %arg0, %c0_i32 : i32, i32
  }
  func.func @transform_4(%arg0: i32) -> (i32, i32) {
    %c0_i32 = arith.constant 0 : i32
    %c0_i32_0 = arith.constant 0 : i32
    return %arg0, %c0_i32 : i32, i32
  }
  func.func @transform_5(%arg0: i32) -> (i32, i32, i32) {
    %c0_i32 = arith.constant 0 : i32
    %c0_i32_0 = arith.constant 0 : i32
    %c0_i32_1 = arith.constant 0 : i32
    return %arg0, %c0_i32, %c0_i32_0 : i32, i32, i32
  }
  func.func @transform_6(%arg0: i32) -> (i32, i32, i32) {
    %c0_i32 = arith.constant 0 : i32
    %c0_i32_0 = arith.constant 0 : i32
    %c0_i32_1 = arith.constant 0 : i32
    return %arg0, %c0_i32, %c0_i32_0 : i32, i32, i32
  }
  func.func @transform_7(%arg0: i32) -> (i32, i32, i32) {
    %c0_i32 = arith.constant 0 : i32
    %c0_i32_0 = arith.constant 0 : i32
    %c0_i32_1 = arith.constant 0 : i32
    return %arg0, %c0_i32, %c0_i32_0 : i32, i32, i32
  }
  func.func @transform_8(%arg0: i32) -> (i32, i32, i32) {
    %c0_i32 = arith.constant 0 : i32
    %c0_i32_0 = arith.constant 0 : i32
    %c0_i32_1 = arith.constant 0 : i32
    return %arg0, %c0_i32, %c0_i32_0 : i32, i32, i32
  }
}

module attributes {stable_mosaic.version = 11 : i64} {
  func.func @_bn_relu_conv_fxf_stats_kernel(%arg0: i32, %arg1: i32, %arg2: i32, %arg3: memref<1x1x10x4xf32, #tpu.memory_space<vmem>>, %arg4: memref<1x4xf32, #tpu.memory_space<vmem>>, %arg5: memref<1x4xf32, #tpu.memory_space<vmem>>, %arg6: memref<1x3x4x6xf32, #tpu.memory_space<vmem>>, %arg7: memref<8x6xf32, #tpu.memory_space<vmem>>, %arg8: memref<1x1x6xf32, #tpu.memory_space<vmem>>, %arg9: memref<1x1x6xf32, #tpu.memory_space<vmem>>) attributes {dimension_semantics = [#tpu.dimension_semantics<parallel>, #tpu.dimension_semantics<parallel>, #tpu.dimension_semantics<arbitrary>], iteration_bounds = array<i64: 2, 8, 3>, scalar_prefetch = 0 : i64, scratch_operands = 0 : i64, tpu.core_type = #tpu.core_type<tc>, window_params = [{transform_indices = @transform_0, window_bounds = array<i64: 1, 1, 10, 4>}, {pipeline_mode = #tpu.pipeline_mode<synchronous>, transform_indices = @transform_1, window_bounds = array<i64: 1, 4>}, {pipeline_mode = #tpu.pipeline_mode<synchronous>, transform_indices = @transform_2, window_bounds = array<i64: 1, 4>}, {transform_indices = @transform_3, window_bounds = array<i64: 1, 3, 4, 6>}, {transform_indices = @transform_4, window_bounds = array<i64: 8, 6>}, {transform_indices = @transform_5, window_bounds = array<i64: 1, 1, 6>}, {transform_indices = @transform_6, window_bounds = array<i64: 1, 1, 6>}]} {
    %c0_i32 = arith.constant 0 : i32
    %0 = arith.cmpi eq, %arg2, %c0_i32 : i32
    %1 = arith.extui %0 : i1 to i32
    %c0_i32_0 = arith.constant 0 : i32
    %2 = arith.cmpi ne, %1, %c0_i32_0 : i32
    scf.if %2 {
      %cst = arith.constant 0.000000e+00 : f32
      %12 = vector.broadcast %cst : f32 to vector<8x6xf32>
      %c0 = arith.constant 0 : index
      %c0_3 = arith.constant 0 : index
      %13 = vector.load %arg7[%c0, %c0_3] : memref<8x6xf32, #tpu.memory_space<vmem>>, vector<8x6xf32>
      tpu.vector_store %arg7[%c0, %c0_3], %12 {strides = array<i32>} : memref<8x6xf32, #tpu.memory_space<vmem>>, vector<8x6xf32>,
    } else {
    }
    %3 = arith.addi %arg1, %arg2 : i32
    %c1_i32 = arith.constant 1 : i32
    %4 = arith.cmpi sge, %3, %c1_i32 : i32
    %c9_i32 = arith.constant 9 : i32
    %5 = arith.cmpi slt, %3, %c9_i32 : i32
    %6 = arith.andi %4, %5 : i1
    %7 = arith.extui %6 : i1 to i32
    %c0_i32_1 = arith.constant 0 : i32
    %8 = arith.cmpi ne, %7, %c0_i32_1 : i32
    scf.if %8 {
      %12 = tpu.iota {dimensions = array<i32: 0>} : vector<8x4xi32>
      %cst = arith.constant 0.000000e+00 : f32
      %13 = vector.broadcast %cst : f32 to vector<8x6xf32>
      %c0 = arith.constant 0 : index
      %c0_3 = arith.constant 0 : index
      %c0_4 = arith.constant 0 : index
      %c0_5 = arith.constant 0 : index
      %14 = vector.load %arg3[%c0, %c0_3, %c0_4, %c0_5] : memref<1x1x10x4xf32, #tpu.memory_space<vmem>>, vector<1x1x8x4xf32>
      %15 = vector.shape_cast %14 : vector<1x1x8x4xf32> to vector<8x4xf32>
      %c0_6 = arith.constant 0 : index
      %c0_7 = arith.constant 0 : index
      %16 = vector.load %arg4[%c0_6, %c0_7] : memref<1x4xf32, #tpu.memory_space<vmem>>, vector<1x4xf32>
      %17 = vector.broadcast %16 : vector<1x4xf32> to vector<8x4xf32>
      %18 = arith.mulf %15, %17 : vector<8x4xf32>
      %c0_8 = arith.constant 0 : index
      %c0_9 = arith.constant 0 : index
      %19 = vector.load %arg5[%c0_8, %c0_9] : memref<1x4xf32, #tpu.memory_space<vmem>>, vector<1x4xf32>
      %20 = vector.broadcast %19 : vector<1x4xf32> to vector<8x4xf32>
      %21 = arith.addf %18, %20 : vector<8x4xf32>
      %cst_10 = arith.constant 0.000000e+00 : f32
      %22 = vector.broadcast %cst_10 : f32 to vector<8x4xf32>
      %23 = arith.maximumf %21, %22 : vector<8x4xf32>
      %c0_i32_11 = arith.constant 0 : i32
      %24 = vector.broadcast %c0_i32_11 : i32 to vector<8x4xi32>
      %25 = arith.addi %12, %24 : vector<8x4xi32>
      %c1_i32_12 = arith.constant 1 : i32
      %26 = vector.broadcast %c1_i32_12 : i32 to vector<8x4xi32>
      %27 = arith.cmpi sge, %25, %26 : vector<8x4xi32>
      %c9_i32_13 = arith.constant 9 : i32
      %28 = vector.broadcast %c9_i32_13 : i32 to vector<8x4xi32>
      %29 = arith.cmpi slt, %25, %28 : vector<8x4xi32>
      %30 = arith.andi %27, %29 : vector<8x4xi1>
      %cst_14 = arith.constant 0.000000e+00 : f32
      %31 = vector.broadcast %cst_14 : f32 to vector<8x4xf32>
      %32 = arith.select %30, %23, %31 : vector<8x4xi1>, vector<8x4xf32>
      %c0_15 = arith.constant 0 : index
      %c0_16 = arith.constant 0 : index
      %c0_17 = arith.constant 0 : index
      %c0_18 = arith.constant 0 : index
      %33 = vector.load %arg6[%c0_15, %c0_16, %c0_17, %c0_18] : memref<1x3x4x6xf32, #tpu.memory_space<vmem>>, vector<1x1x4x6xf32>
      %34 = vector.shape_cast %33 : vector<1x1x4x6xf32> to vector<4x6xf32>
      %cst_19 = arith.constant dense<0.000000e+00> : vector<8x6xf32>
      %35 = tpu.matmul %32, %34, %cst_19 {dimension_numbers = #tpu.dot_dimension_numbers<[1], [0], [0], [1], [0, 0, 1, 1], [], []>} : vector<8x4xf32>, vector<4x6xf32>, vector<8x6xf32> -> vector<8x6xf32>
      %36 = arith.addf %13, %35 : vector<8x6xf32>
      %c0_20 = arith.constant 0 : index
      %c0_21 = arith.constant 0 : index
      %c1 = arith.constant 1 : index
      %c0_22 = arith.constant 0 : index
      %37 = vector.load %arg3[%c0_20, %c0_21, %c1, %c0_22] : memref<1x1x10x4xf32, #tpu.memory_space<vmem>>, vector<1x1x8x4xf32>
      %38 = vector.shape_cast %37 : vector<1x1x8x4xf32> to vector<8x4xf32>
      %c0_23 = arith.constant 0 : index
      %c0_24 = arith.constant 0 : index
      %39 = vector.load %arg4[%c0_23, %c0_24] : memref<1x4xf32, #tpu.memory_space<vmem>>, vector<1x4xf32>
      %40 = vector.broadcast %39 : vector<1x4xf32> to vector<8x4xf32>
      %41 = arith.mulf %38, %40 : vector<8x4xf32>
      %c0_25 = arith.constant 0 : index
      %c0_26 = arith.constant 0 : index
      %42 = vector.load %arg5[%c0_25, %c0_26] : memref<1x4xf32, #tpu.memory_space<vmem>>, vector<1x4xf32>
      %43 = vector.broadcast %42 : vector<1x4xf32> to vector<8x4xf32>
      %44 = arith.addf %41, %43 : vector<8x4xf32>
      %cst_27 = arith.constant 0.000000e+00 : f32
      %45 = vector.broadcast %cst_27 : f32 to vector<8x4xf32>
      %46 = arith.maximumf %44, %45 : vector<8x4xf32>
      %c1_i32_28 = arith.constant 1 : i32
      %47 = vector.broadcast %c1_i32_28 : i32 to vector<8x4xi32>
      %48 = arith.addi %12, %47 : vector<8x4xi32>
      %c1_i32_29 = arith.constant 1 : i32
      %49 = vector.broadcast %c1_i32_29 : i32 to vector<8x4xi32>
      %50 = arith.cmpi sge, %48, %49 : vector<8x4xi32>
      %c9_i32_30 = arith.constant 9 : i32
      %51 = vector.broadcast %c9_i32_30 : i32 to vector<8x4xi32>
      %52 = arith.cmpi slt, %48, %51 : vector<8x4xi32>
      %53 = arith.andi %50, %52 : vector<8x4xi1>
      %cst_31 = arith.constant 0.000000e+00 : f32
      %54 = vector.broadcast %cst_31 : f32 to vector<8x4xf32>
      %55 = arith.select %53, %46, %54 : vector<8x4xi1>, vector<8x4xf32>
      %c0_32 = arith.constant 0 : index
      %c1_33 = arith.constant 1 : index
      %c0_34 = arith.constant 0 : index
      %c0_35 = arith.constant 0 : index
      %56 = vector.load %arg6[%c0_32, %c1_33, %c0_34, %c0_35] : memref<1x3x4x6xf32, #tpu.memory_space<vmem>>, vector<1x1x4x6xf32>
      %57 = vector.shape_cast %56 : vector<1x1x4x6xf32> to vector<4x6xf32>
      %cst_36 = arith.constant dense<0.000000e+00> : vector<8x6xf32>
      %58 = tpu.matmul %55, %57, %cst_36 {dimension_numbers = #tpu.dot_dimension_numbers<[1], [0], [0], [1], [0, 0, 1, 1], [], []>} : vector<8x4xf32>, vector<4x6xf32>, vector<8x6xf32> -> vector<8x6xf32>
      %59 = arith.addf %36, %58 : vector<8x6xf32>
      %c0_37 = arith.constant 0 : index
      %c0_38 = arith.constant 0 : index
      %c2 = arith.constant 2 : index
      %c0_39 = arith.constant 0 : index
      %60 = vector.load %arg3[%c0_37, %c0_38, %c2, %c0_39] : memref<1x1x10x4xf32, #tpu.memory_space<vmem>>, vector<1x1x8x4xf32>
      %61 = vector.shape_cast %60 : vector<1x1x8x4xf32> to vector<8x4xf32>
      %c0_40 = arith.constant 0 : index
      %c0_41 = arith.constant 0 : index
      %62 = vector.load %arg4[%c0_40, %c0_41] : memref<1x4xf32, #tpu.memory_space<vmem>>, vector<1x4xf32>
      %63 = vector.broadcast %62 : vector<1x4xf32> to vector<8x4xf32>
      %64 = arith.mulf %61, %63 : vector<8x4xf32>
      %c0_42 = arith.constant 0 : index
      %c0_43 = arith.constant 0 : index
      %65 = vector.load %arg5[%c0_42, %c0_43] : memref<1x4xf32, #tpu.memory_space<vmem>>, vector<1x4xf32>
      %66 = vector.broadcast %65 : vector<1x4xf32> to vector<8x4xf32>
      %67 = arith.addf %64, %66 : vector<8x4xf32>
      %cst_44 = arith.constant 0.000000e+00 : f32
      %68 = vector.broadcast %cst_44 : f32 to vector<8x4xf32>
      %69 = arith.maximumf %67, %68 : vector<8x4xf32>
      %c2_i32_45 = arith.constant 2 : i32
      %70 = vector.broadcast %c2_i32_45 : i32 to vector<8x4xi32>
      %71 = arith.addi %12, %70 : vector<8x4xi32>
      %c1_i32_46 = arith.constant 1 : i32
      %72 = vector.broadcast %c1_i32_46 : i32 to vector<8x4xi32>
      %73 = arith.cmpi sge, %71, %72 : vector<8x4xi32>
      %c9_i32_47 = arith.constant 9 : i32
      %74 = vector.broadcast %c9_i32_47 : i32 to vector<8x4xi32>
      %75 = arith.cmpi slt, %71, %74 : vector<8x4xi32>
      %76 = arith.andi %73, %75 : vector<8x4xi1>
      %cst_48 = arith.constant 0.000000e+00 : f32
      %77 = vector.broadcast %cst_48 : f32 to vector<8x4xf32>
      %78 = arith.select %76, %69, %77 : vector<8x4xi1>, vector<8x4xf32>
      %c0_49 = arith.constant 0 : index
      %c2_50 = arith.constant 2 : index
      %c0_51 = arith.constant 0 : index
      %c0_52 = arith.constant 0 : index
      %79 = vector.load %arg6[%c0_49, %c2_50, %c0_51, %c0_52] : memref<1x3x4x6xf32, #tpu.memory_space<vmem>>, vector<1x1x4x6xf32>
      %80 = vector.shape_cast %79 : vector<1x1x4x6xf32> to vector<4x6xf32>
      %cst_53 = arith.constant dense<0.000000e+00> : vector<8x6xf32>
      %81 = tpu.matmul %78, %80, %cst_53 {dimension_numbers = #tpu.dot_dimension_numbers<[1], [0], [0], [1], [0, 0, 1, 1], [], []>} : vector<8x4xf32>, vector<4x6xf32>, vector<8x6xf32> -> vector<8x6xf32>
      %82 = arith.addf %59, %81 : vector<8x6xf32>
      %c0_54 = arith.constant 0 : index
      %c0_55 = arith.constant 0 : index
      %83 = vector.load %arg7[%c0_54, %c0_55] : memref<8x6xf32, #tpu.memory_space<vmem>>, vector<8x6xf32>
      %84 = arith.addf %83, %82 : vector<8x6xf32>
      %c0_56 = arith.constant 0 : index
      %c0_57 = arith.constant 0 : index
      %85 = vector.load %arg7[%c0_56, %c0_57] : memref<8x6xf32, #tpu.memory_space<vmem>>, vector<8x6xf32>
      tpu.vector_store %arg7[%c0_56, %c0_57], %84 {strides = array<i32>} : memref<8x6xf32, #tpu.memory_space<vmem>>, vector<8x6xf32>,
    } else {
    }
    %c2_i32 = arith.constant 2 : i32
    %9 = arith.cmpi eq, %arg2, %c2_i32 : i32
    %10 = arith.extui %9 : i1 to i32
    %c0_i32_2 = arith.constant 0 : i32
    %11 = arith.cmpi ne, %10, %c0_i32_2 : i32
    scf.if %11 {
      %c0 = arith.constant 0 : index
      %c0_3 = arith.constant 0 : index
      %12 = vector.load %arg7[%c0, %c0_3] : memref<8x6xf32, #tpu.memory_space<vmem>>, vector<8x6xf32>
      %cst = arith.constant dense<0.000000e+00> : vector<6xf32>
      %13 = vector.multi_reduction <add>, %12, %cst [0] : vector<8x6xf32> to vector<6xf32>
      %14 = vector.shape_cast %13 : vector<6xf32> to vector<1x6xf32>
      %15 = vector.shape_cast %14 : vector<1x6xf32> to vector<1x1x6xf32>
      %c0_4 = arith.constant 0 : index
      %c0_5 = arith.constant 0 : index
      %c0_6 = arith.constant 0 : index
      %16 = vector.load %arg8[%c0_4, %c0_5, %c0_6] : memref<1x1x6xf32, #tpu.memory_space<vmem>>, vector<1x1x6xf32>
      tpu.vector_store %arg8[%c0_4, %c0_5, %c0_6], %15 {strides = array<i32>} : memref<1x1x6xf32, #tpu.memory_space<vmem>>, vector<1x1x6xf32>,
      %17 = arith.mulf %12, %12 : vector<8x6xf32>
      %cst_7 = arith.constant dense<0.000000e+00> : vector<6xf32>
      %18 = vector.multi_reduction <add>, %17, %cst_7 [0] : vector<8x6xf32> to vector<6xf32>
      %19 = vector.shape_cast %18 : vector<6xf32> to vector<1x6xf32>
      %20 = vector.shape_cast %19 : vector<1x6xf32> to vector<1x1x6xf32>
      %c0_8 = arith.constant 0 : index
      %c0_9 = arith.constant 0 : index
      %c0_10 = arith.constant 0 : index
      %21 = vector.load %arg9[%c0_8, %c0_9, %c0_10] : memref<1x1x6xf32, #tpu.memory_space<vmem>>, vector<1x1x6xf32>
      tpu.vector_store %arg9[%c0_8, %c0_9, %c0_10], %20 {strides = array<i32>} : memref<1x1x6xf32, #tpu.memory_space<vmem>>, vector<1x1x6xf32>,
    } else {
    }
    return
  }
  func.func @transform_0(%arg0: i32, %arg1: i32, %arg2: i32) -> (i32, i32, i32, i32) {
    %0 = arith.addi %arg1, %arg2 : i32
    %c0_i32 = arith.constant 0 : i32
    %c0_i32_0 = arith.constant 0 : i32
    %c0_i32_1 = arith.constant 0 : i32
    return %arg0, %0, %c0_i32, %c0_i32_0 : i32, i32, i32, i32
  }
  func.func @transform_1(%arg0: i32, %arg1: i32, %arg2: i32) -> (i32, i32) {
    %c0_i32 = arith.constant 0 : i32
    %c0_i32_0 = arith.constant 0 : i32
    %c0_i32_1 = arith.constant 0 : i32
    return %c0_i32, %c0_i32_0 : i32, i32
  }
  func.func @transform_2(%arg0: i32, %arg1: i32, %arg2: i32) -> (i32, i32) {
    %c0_i32 = arith.constant 0 : i32
    %c0_i32_0 = arith.constant 0 : i32
    %c0_i32_1 = arith.constant 0 : i32
    return %c0_i32, %c0_i32_0 : i32, i32
  }
  func.func @transform_3(%arg0: i32, %arg1: i32, %arg2: i32) -> (i32, i32, i32, i32) {
    %c0_i32 = arith.constant 0 : i32
    %c0_i32_0 = arith.constant 0 : i32
    %c0_i32_1 = arith.constant 0 : i32
    %c0_i32_2 = arith.constant 0 : i32
    return %arg2, %c0_i32, %c0_i32_0, %c0_i32_1 : i32, i32, i32, i32
  }
  func.func @transform_4(%arg0: i32, %arg1: i32, %arg2: i32) -> (i32, i32) {
    %c8_i32 = arith.constant 8 : i32
    %0 = arith.muli %arg0, %c8_i32 : i32
    %1 = arith.addi %0, %arg1 : i32
    %c0_i32 = arith.constant 0 : i32
    %c0_i32_0 = arith.constant 0 : i32
    return %1, %c0_i32 : i32, i32
  }
  func.func @transform_5(%arg0: i32, %arg1: i32, %arg2: i32) -> (i32, i32, i32) {
    %c8_i32 = arith.constant 8 : i32
    %0 = arith.muli %arg0, %c8_i32 : i32
    %1 = arith.addi %0, %arg1 : i32
    %c0_i32 = arith.constant 0 : i32
    %c0_i32_0 = arith.constant 0 : i32
    %c0_i32_1 = arith.constant 0 : i32
    return %1, %c0_i32, %c0_i32_0 : i32, i32, i32
  }
  func.func @transform_6(%arg0: i32, %arg1: i32, %arg2: i32) -> (i32, i32, i32) {
    %c8_i32 = arith.constant 8 : i32
    %0 = arith.muli %arg0, %c8_i32 : i32
    %1 = arith.addi %0, %arg1 : i32
    %c0_i32 = arith.constant 0 : i32
    %c0_i32_0 = arith.constant 0 : i32
    %c0_i32_1 = arith.constant 0 : i32
    return %1, %c0_i32, %c0_i32_0 : i32, i32, i32
  }
}

module attributes {stable_mosaic.version = 11 : i64} {
  func.func @_bn_relu_1x1_stats_kernel(%arg0: i32, %arg1: memref<128x6xf32, #tpu.memory_space<vmem>>, %arg2: memref<1x6xf32, #tpu.memory_space<vmem>>, %arg3: memref<1x6xf32, #tpu.memory_space<vmem>>, %arg4: memref<6x8xf32, #tpu.memory_space<vmem>>, %arg5: memref<128x8xf32, #tpu.memory_space<vmem>>, %arg6: memref<1x1x8xf32, #tpu.memory_space<vmem>>, %arg7: memref<1x1x8xf32, #tpu.memory_space<vmem>>) attributes {dimension_semantics = [#tpu.dimension_semantics<parallel>], iteration_bounds = array<i64: 1>, scalar_prefetch = 0 : i64, scratch_operands = 0 : i64, tpu.core_type = #tpu.core_type<tc>, window_params = [{transform_indices = @transform_0, window_bounds = array<i64: 128, 6>}, {pipeline_mode = #tpu.pipeline_mode<synchronous>, transform_indices = @transform_1, window_bounds = array<i64: 1, 6>}, {pipeline_mode = #tpu.pipeline_mode<synchronous>, transform_indices = @transform_2, window_bounds = array<i64: 1, 6>}, {pipeline_mode = #tpu.pipeline_mode<synchronous>, transform_indices = @transform_3, window_bounds = array<i64: 6, 8>}, {transform_indices = @transform_4, window_bounds = array<i64: 128, 8>}, {transform_indices = @transform_5, window_bounds = array<i64: 1, 1, 8>}, {transform_indices = @transform_6, window_bounds = array<i64: 1, 1, 8>}]} {
    %c0 = arith.constant 0 : index
    %c0_0 = arith.constant 0 : index
    %0 = vector.load %arg1[%c0, %c0_0] : memref<128x6xf32, #tpu.memory_space<vmem>>, vector<128x6xf32>
    %c0_1 = arith.constant 0 : index
    %c0_2 = arith.constant 0 : index
    %1 = vector.load %arg2[%c0_1, %c0_2] : memref<1x6xf32, #tpu.memory_space<vmem>>, vector<1x6xf32>
    %2 = vector.broadcast %1 : vector<1x6xf32> to vector<128x6xf32>
    %3 = arith.mulf %0, %2 : vector<128x6xf32>
    %c0_3 = arith.constant 0 : index
    %c0_4 = arith.constant 0 : index
    %4 = vector.load %arg3[%c0_3, %c0_4] : memref<1x6xf32, #tpu.memory_space<vmem>>, vector<1x6xf32>
    %5 = vector.broadcast %4 : vector<1x6xf32> to vector<128x6xf32>
    %6 = arith.addf %3, %5 : vector<128x6xf32>
    %cst = arith.constant 0.000000e+00 : f32
    %7 = vector.broadcast %cst : f32 to vector<128x6xf32>
    %8 = arith.maximumf %6, %7 : vector<128x6xf32>
    %c0_5 = arith.constant 0 : index
    %c0_6 = arith.constant 0 : index
    %9 = vector.load %arg4[%c0_5, %c0_6] : memref<6x8xf32, #tpu.memory_space<vmem>>, vector<6x8xf32>
    %cst_7 = arith.constant dense<0.000000e+00> : vector<128x8xf32>
    %10 = tpu.matmul %8, %9, %cst_7 {dimension_numbers = #tpu.dot_dimension_numbers<[1], [0], [0], [1], [0, 0, 1, 1], [], []>} : vector<128x6xf32>, vector<6x8xf32>, vector<128x8xf32> -> vector<128x8xf32>
    %c0_8 = arith.constant 0 : index
    %c0_9 = arith.constant 0 : index
    %11 = vector.load %arg5[%c0_8, %c0_9] : memref<128x8xf32, #tpu.memory_space<vmem>>, vector<128x8xf32>
    tpu.vector_store %arg5[%c0_8, %c0_9], %10 {strides = array<i32>} : memref<128x8xf32, #tpu.memory_space<vmem>>, vector<128x8xf32>,
    %cst_10 = arith.constant dense<0.000000e+00> : vector<8xf32>
    %12 = vector.multi_reduction <add>, %10, %cst_10 [0] : vector<128x8xf32> to vector<8xf32>
    %13 = vector.shape_cast %12 : vector<8xf32> to vector<1x8xf32>
    %14 = vector.shape_cast %13 : vector<1x8xf32> to vector<1x1x8xf32>
    %c0_11 = arith.constant 0 : index
    %c0_12 = arith.constant 0 : index
    %c0_13 = arith.constant 0 : index
    %15 = vector.load %arg6[%c0_11, %c0_12, %c0_13] : memref<1x1x8xf32, #tpu.memory_space<vmem>>, vector<1x1x8xf32>
    tpu.vector_store %arg6[%c0_11, %c0_12, %c0_13], %14 {strides = array<i32>} : memref<1x1x8xf32, #tpu.memory_space<vmem>>, vector<1x1x8xf32>,
    %16 = arith.mulf %10, %10 : vector<128x8xf32>
    %cst_14 = arith.constant dense<0.000000e+00> : vector<8xf32>
    %17 = vector.multi_reduction <add>, %16, %cst_14 [0] : vector<128x8xf32> to vector<8xf32>
    %18 = vector.shape_cast %17 : vector<8xf32> to vector<1x8xf32>
    %19 = vector.shape_cast %18 : vector<1x8xf32> to vector<1x1x8xf32>
    %c0_15 = arith.constant 0 : index
    %c0_16 = arith.constant 0 : index
    %c0_17 = arith.constant 0 : index
    %20 = vector.load %arg7[%c0_15, %c0_16, %c0_17] : memref<1x1x8xf32, #tpu.memory_space<vmem>>, vector<1x1x8xf32>
    tpu.vector_store %arg7[%c0_15, %c0_16, %c0_17], %19 {strides = array<i32>} : memref<1x1x8xf32, #tpu.memory_space<vmem>>, vector<1x1x8xf32>,
    return
  }
  func.func @transform_0(%arg0: i32) -> (i32, i32) {
    %c0_i32 = arith.constant 0 : i32
    %c0_i32_0 = arith.constant 0 : i32
    return %arg0, %c0_i32 : i32, i32
  }
  func.func @transform_1(%arg0: i32) -> (i32, i32) {
    %c0_i32 = arith.constant 0 : i32
    %c0_i32_0 = arith.constant 0 : i32
    %c0_i32_1 = arith.constant 0 : i32
    return %c0_i32, %c0_i32_0 : i32, i32
  }
  func.func @transform_2(%arg0: i32) -> (i32, i32) {
    %c0_i32 = arith.constant 0 : i32
    %c0_i32_0 = arith.constant 0 : i32
    %c0_i32_1 = arith.constant 0 : i32
    return %c0_i32, %c0_i32_0 : i32, i32
  }
  func.func @transform_3(%arg0: i32) -> (i32, i32) {
    %c0_i32 = arith.constant 0 : i32
    %c0_i32_0 = arith.constant 0 : i32
    %c0_i32_1 = arith.constant 0 : i32
    return %c0_i32, %c0_i32_0 : i32, i32
  }
  func.func @transform_4(%arg0: i32) -> (i32, i32) {
    %c0_i32 = arith.constant 0 : i32
    %c0_i32_0 = arith.constant 0 : i32
    return %arg0, %c0_i32 : i32, i32
  }
  func.func @transform_5(%arg0: i32) -> (i32, i32, i32) {
    %c0_i32 = arith.constant 0 : i32
    %c0_i32_0 = arith.constant 0 : i32
    %c0_i32_1 = arith.constant 0 : i32
    return %arg0, %c0_i32, %c0_i32_0 : i32, i32, i32
  }
  func.func @transform_6(%arg0: i32) -> (i32, i32, i32) {
    %c0_i32 = arith.constant 0 : i32
    %c0_i32_0 = arith.constant 0 : i32
    %c0_i32_1 = arith.constant 0 : i32
    return %arg0, %c0_i32, %c0_i32_0 : i32, i32, i32
  }
}

module attributes {stable_mosaic.version = 11 : i64} {
  func.func @_bn_add_bn_relu_kernel(%arg0: i32, %arg1: memref<128x8xf32, #tpu.memory_space<vmem>>, %arg2: memref<1x8xf32, #tpu.memory_space<vmem>>, %arg3: memref<1x8xf32, #tpu.memory_space<vmem>>, %arg4: memref<128x8xf32, #tpu.memory_space<vmem>>, %arg5: memref<1x8xf32, #tpu.memory_space<vmem>>, %arg6: memref<1x8xf32, #tpu.memory_space<vmem>>, %arg7: memref<128x8xf32, #tpu.memory_space<vmem>>) attributes {dimension_semantics = [#tpu.dimension_semantics<parallel>], iteration_bounds = array<i64: 1>, scalar_prefetch = 0 : i64, scratch_operands = 0 : i64, tpu.core_type = #tpu.core_type<tc>, window_params = [{transform_indices = @transform_0, window_bounds = array<i64: 128, 8>}, {pipeline_mode = #tpu.pipeline_mode<synchronous>, transform_indices = @transform_1, window_bounds = array<i64: 1, 8>}, {pipeline_mode = #tpu.pipeline_mode<synchronous>, transform_indices = @transform_2, window_bounds = array<i64: 1, 8>}, {transform_indices = @transform_3, window_bounds = array<i64: 128, 8>}, {pipeline_mode = #tpu.pipeline_mode<synchronous>, transform_indices = @transform_4, window_bounds = array<i64: 1, 8>}, {pipeline_mode = #tpu.pipeline_mode<synchronous>, transform_indices = @transform_5, window_bounds = array<i64: 1, 8>}, {transform_indices = @transform_6, window_bounds = array<i64: 128, 8>}]} {
    %c0 = arith.constant 0 : index
    %c0_0 = arith.constant 0 : index
    %0 = vector.load %arg1[%c0, %c0_0] : memref<128x8xf32, #tpu.memory_space<vmem>>, vector<128x8xf32>
    %c0_1 = arith.constant 0 : index
    %c0_2 = arith.constant 0 : index
    %1 = vector.load %arg2[%c0_1, %c0_2] : memref<1x8xf32, #tpu.memory_space<vmem>>, vector<1x8xf32>
    %2 = vector.broadcast %1 : vector<1x8xf32> to vector<128x8xf32>
    %3 = arith.mulf %0, %2 : vector<128x8xf32>
    %c0_3 = arith.constant 0 : index
    %c0_4 = arith.constant 0 : index
    %4 = vector.load %arg3[%c0_3, %c0_4] : memref<1x8xf32, #tpu.memory_space<vmem>>, vector<1x8xf32>
    %5 = vector.broadcast %4 : vector<1x8xf32> to vector<128x8xf32>
    %6 = arith.addf %3, %5 : vector<128x8xf32>
    %c0_5 = arith.constant 0 : index
    %c0_6 = arith.constant 0 : index
    %7 = vector.load %arg4[%c0_5, %c0_6] : memref<128x8xf32, #tpu.memory_space<vmem>>, vector<128x8xf32>
    %c0_7 = arith.constant 0 : index
    %c0_8 = arith.constant 0 : index
    %8 = vector.load %arg5[%c0_7, %c0_8] : memref<1x8xf32, #tpu.memory_space<vmem>>, vector<1x8xf32>
    %9 = vector.broadcast %8 : vector<1x8xf32> to vector<128x8xf32>
    %10 = arith.mulf %7, %9 : vector<128x8xf32>
    %11 = arith.addf %6, %10 : vector<128x8xf32>
    %c0_9 = arith.constant 0 : index
    %c0_10 = arith.constant 0 : index
    %12 = vector.load %arg6[%c0_9, %c0_10] : memref<1x8xf32, #tpu.memory_space<vmem>>, vector<1x8xf32>
    %13 = vector.broadcast %12 : vector<1x8xf32> to vector<128x8xf32>
    %14 = arith.addf %11, %13 : vector<128x8xf32>
    %cst = arith.constant 0.000000e+00 : f32
    %15 = vector.broadcast %cst : f32 to vector<128x8xf32>
    %16 = arith.maximumf %14, %15 : vector<128x8xf32>
    %c0_11 = arith.constant 0 : index
    %c0_12 = arith.constant 0 : index
    %17 = vector.load %arg7[%c0_11, %c0_12] : memref<128x8xf32, #tpu.memory_space<vmem>>, vector<128x8xf32>
    tpu.vector_store %arg7[%c0_11, %c0_12], %16 {strides = array<i32>} : memref<128x8xf32, #tpu.memory_space<vmem>>, vector<128x8xf32>,
    return
  }
  func.func @transform_0(%arg0: i32) -> (i32, i32) {
    %c0_i32 = arith.constant 0 : i32
    %c0_i32_0 = arith.constant 0 : i32
    return %arg0, %c0_i32 : i32, i32
  }
  func.func @transform_1(%arg0: i32) -> (i32, i32) {
    %c0_i32 = arith.constant 0 : i32
    %c0_i32_0 = arith.constant 0 : i32
    %c0_i32_1 = arith.constant 0 : i32
    return %c0_i32, %c0_i32_0 : i32, i32
  }
  func.func @transform_2(%arg0: i32) -> (i32, i32) {
    %c0_i32 = arith.constant 0 : i32
    %c0_i32_0 = arith.constant 0 : i32
    %c0_i32_1 = arith.constant 0 : i32
    return %c0_i32, %c0_i32_0 : i32, i32
  }
  func.func @transform_3(%arg0: i32) -> (i32, i32) {
    %c0_i32 = arith.constant 0 : i32
    %c0_i32_0 = arith.constant 0 : i32
    return %arg0, %c0_i32 : i32, i32
  }
  func.func @transform_4(%arg0: i32) -> (i32, i32) {
    %c0_i32 = arith.constant 0 : i32
    %c0_i32_0 = arith.constant 0 : i32
    %c0_i32_1 = arith.constant 0 : i32
    return %c0_i32, %c0_i32_0 : i32, i32
  }
  func.func @transform_5(%arg0: i32) -> (i32, i32) {
    %c0_i32 = arith.constant 0 : i32
    %c0_i32_0 = arith.constant 0 : i32
    %c0_i32_1 = arith.constant 0 : i32
    return %c0_i32, %c0_i32_0 : i32, i32
  }
  func.func @transform_6(%arg0: i32) -> (i32, i32) {
    %c0_i32 = arith.constant 0 : i32
    %c0_i32_0 = arith.constant 0 : i32
    return %arg0, %c0_i32 : i32, i32
  }
}

</mosaic_0001>

<llo_original>
// kernel: conv_block_forward.4
$region0: #{conv_block_forward.4}
  #allocation0 [shape = 'u32[]', space=smem, size = 0x4, offset = 0x4, fixed_abs, tag = 'smem constant byte address 0x4 - core index']
  #allocation1 [shape = 'u32[72,128]{1,0:T(1,128)}', space=vmem, size = 0x9000, scoped, tag = 'internal scratch']
  %s0 = inlined_call_operand.vmem [shape: f32[128,4], index: 0, kind: input, shape index: {}]
  %s1 = inlined_call_operand.vmem [shape: f32[4,4], index: 1, kind: input, shape index: {}]
  %s2 = inlined_call_operand.vmem [shape: f32[4,8], index: 2, kind: input, shape index: {}]
  %s3 = inlined_call_operand.vmem [shape: f32[128,4], index: 3, kind: output, shape index: {0}]
  %s4 = inlined_call_operand.vmem [shape: f32[128,8], index: 4, kind: output, shape index: {1}]
  %s5 = inlined_call_operand.vmem [shape: f32[1,1,4], index: 5, kind: output, shape index: {2}]
  %s6 = inlined_call_operand.vmem [shape: f32[1,1,4], index: 6, kind: output, shape index: {3}]
  %s7 = inlined_call_operand.vmem [shape: f32[1,1,8], index: 7, kind: output, shape index: {4}]
  %s8 = inlined_call_operand.vmem [shape: f32[1,1,8], index: 8, kind: output, shape index: {5}]
  %9 = xla_tuple %s3, %s4, %s5, %s6, %s7, %s8
  %s10 = sld [smem:[#allocation0]]
  $region62: #{conv_block_forward.4} parent=0
    _
  %s12 = ssub.s32 1, %s10
  %s13 = scalar_select 0, %s12, %s10
  // Predicated region
  $region2: #{conv_block_forward.4} parent=0 // pred_check
    _
  $region3: #{conv_block_forward.4} parent=0 // pred_check_branch
    %15 = sbr.rel (0) target = $region5
  $region4: #{conv_block_forward.4} parent=0 // pred_region
    _
  $region5: #{conv_block_forward.4} parent=0 // pred_fallthru
    _
  // Predicated region
  $region6: #{conv_block_forward.4} parent=0 // pred_check
    _
  $region7: #{conv_block_forward.4} parent=0 // pred_check_branch
    %17 = sbr.rel (0) target = $region9
  $region8: #{conv_block_forward.4} parent=0 // pred_region
    _
  $region9: #{conv_block_forward.4} parent=0 // pred_fallthru
    _
  // Predicated region
  $region10: #{conv_block_forward.4} parent=0 // pred_check
    _
  $region11: #{conv_block_forward.4} parent=0 // pred_check_branch
    %19 = sbr.rel (0) target = $region13
  $region12: #{conv_block_forward.4} parent=0 // pred_region
    _
  $region13: #{conv_block_forward.4} parent=0 // pred_fallthru
    _
  %v20 = vld [vmem:[%s0] sm:$0xff]
  %v21 = vld [vmem:[%s0 + $0x8] sm:$0xff]
  %v22 = vld [vmem:[%s0 + $0x10] sm:$0xff]
  %v23 = vld [vmem:[%s0 + $0x18] sm:$0xff]
  %v24 = vld [vmem:[%s0 + $0x20] sm:$0xff]
  %v25 = vld [vmem:[%s0 + $0x28] sm:$0xff]
  %v26 = vld [vmem:[%s0 + $0x30] sm:$0xff]
  %v27 = vld [vmem:[%s0 + $0x38] sm:$0xff]
  %v28 = vld [vmem:[%s0 + $0x40] sm:$0xff]
  %v29 = vld [vmem:[%s0 + $0x48] sm:$0xff]
  %v30 = vld [vmem:[%s0 + $0x50] sm:$0xff]
  %v31 = vld [vmem:[%s0 + $0x58] sm:$0xff]
  %v32 = vld [vmem:[%s0 + $0x60] sm:$0xff]
  %v33 = vld [vmem:[%s0 + $0x68] sm:$0xff]
  %v34 = vld [vmem:[%s0 + $0x70] sm:$0xff]
  %v35 = vld [vmem:[%s0 + $0x78] sm:$0xff]
  %v36 = vld [vmem:[%s1] sm:$0xf]
  %vm37 = vcmask 31744
  %v39 = vsel %vm37, %v20, 0
  %v42 = vsel %vm37, %v21, 0
  %v45 = vsel %vm37, %v22, 0
  %v48 = vsel %vm37, %v23, 0
  %v51 = vsel %vm37, %v24, 0
  %v54 = vsel %vm37, %v25, 0
  %v57 = vsel %vm37, %v26, 0
  %v60 = vsel %vm37, %v27, 0
  %v63 = vsel %vm37, %v28, 0
  %v66 = vsel %vm37, %v29, 0
  %v69 = vsel %vm37, %v30, 0
  %v72 = vsel %vm37, %v31, 0
  %v75 = vsel %vm37, %v32, 0
  %v78 = vsel %vm37, %v33, 0
  %v81 = vsel %vm37, %v34, 0
  %v84 = vsel %vm37, %v35, 0
  %vm86 = vcmask 1043456
  %v88 = vsel %vm86, %v36, 0
  %90 = vmatpush.msra.mxu0 0.0
  %91 = vmatpush.msra.mxu0 0.0
  %92 = vmatpush.msra.mxu0 0.0
  %93 = vmatpush.msra.mxu0 0.0
  %94 = vmatpush.msra.mxu0 0.0
  %95 = vmatpush.msra.mxu0 0.0
  %96 = vmatpush.msra.mxu0 0.0
  %97 = vmatpush.msra.mxu0 0.0
  %98 = vmatpush.msra.mxu0 0.0
  %99 = vmatpush.msra.mxu0 0.0
  %100 = vmatpush.msra.mxu0 0.0
  %101 = vmatpush.msra.mxu0 0.0
  %102 = vmatpush.msra.mxu0 0.0
  %103 = vmatpush.msra.mxu0 0.0
  %104 = vmatpush.msra.mxu0 0.0
  %105 = vmatpush.msra.mxu0 %v88
  %106 = vmatmul.f32.gmra.mxu0 %v39
  %v107 = vpop.f32.mrf.mxu0
  %v108 = vadd.f32 0.0, %v107
  %109 = vmatmul.f32.gmra.mxu0 %v42
  %v110 = vpop.f32.mrf.mxu0
  %v111 = vadd.f32 0.0, %v110
  %112 = vmatmul.f32.gmra.mxu0 %v45
  %v113 = vpop.f32.mrf.mxu0
  %v114 = vadd.f32 0.0, %v113
  %115 = vmatmul.f32.gmra.mxu0 %v48
  %v116 = vpop.f32.mrf.mxu0
  %v117 = vadd.f32 0.0, %v116
  %118 = vmatmul.f32.gmra.mxu0 %v51
  %v119 = vpop.f32.mrf.mxu0
  %v120 = vadd.f32 0.0, %v119
  %121 = vmatmul.f32.gmra.mxu0 %v54
  %v122 = vpop.f32.mrf.mxu0
  %v123 = vadd.f32 0.0, %v122
  %124 = vmatmul.f32.gmra.mxu0 %v57
  %v125 = vpop.f32.mrf.mxu0
  %v126 = vadd.f32 0.0, %v125
  %127 = vmatmul.f32.gmra.mxu0 %v60
  %v128 = vpop.f32.mrf.mxu0
  %v129 = vadd.f32 0.0, %v128
  %130 = vmatmul.f32.gmra.mxu0 %v63
  %v131 = vpop.f32.mrf.mxu0
  %v132 = vadd.f32 0.0, %v131
  %133 = vmatmul.f32.gmra.mxu0 %v66
  %v134 = vpop.f32.mrf.mxu0
  %v135 = vadd.f32 0.0, %v134
  %136 = vmatmul.f32.gmra.mxu0 %v69
  %v137 = vpop.f32.mrf.mxu0
  %v138 = vadd.f32 0.0, %v137
  %139 = vmatmul.f32.gmra.mxu0 %v72
  %v140 = vpop.f32.mrf.mxu0
  %v141 = vadd.f32 0.0, %v140
  %142 = vmatmul.f32.gmra.mxu0 %v75
  %v143 = vpop.f32.mrf.mxu0
  %v144 = vadd.f32 0.0, %v143
  %145 = vmatmul.f32.gmra.mxu0 %v78
  %v146 = vpop.f32.mrf.mxu0
  %v147 = vadd.f32 0.0, %v146
  %148 = vmatmul.f32.gmra.mxu0 %v81
  %v149 = vpop.f32.mrf.mxu0
  %v150 = vadd.f32 0.0, %v149
  %151 = vmatmul.f32.gmra.mxu0 %v84
  %v152 = vpop.f32.mrf.mxu0
  %v153 = vadd.f32 0.0, %v152
  %154 = vdwg.mxu0
  %v155 = vld [vmem:[%s2] sm:$0xf]
  %v157 = vsel %vm86, %v155, 0
  %159 = vmatpush.msra.mxu0 0.0
  %160 = vmatpush.msra.mxu0 0.0
  %161 = vmatpush.msra.mxu0 0.0
  %162 = vmatpush.msra.mxu0 0.0
  %163 = vmatpush.msra.mxu0 0.0
  %164 = vmatpush.msra.mxu0 0.0
  %165 = vmatpush.msra.mxu0 0.0
  %166 = vmatpush.msra.mxu0 0.0
  %167 = vmatpush.msra.mxu0 0.0
  %168 = vmatpush.msra.mxu0 0.0
  %169 = vmatpush.msra.mxu0 0.0
  %170 = vmatpush.msra.mxu0 0.0
  %171 = vmatpush.msra.mxu0 0.0
  %172 = vmatpush.msra.mxu0 0.0
  %173 = vmatpush.msra.mxu0 0.0
  %174 = vmatpush.msra.mxu0 %v157
  %175 = vmatmul.f32.gmra.mxu0 %v39
  %v176 = vpop.f32.mrf.mxu0
  %v177 = vadd.f32 0.0, %v176
  %178 = vmatmul.f32.gmra.mxu0 %v42
  %v179 = vpop.f32.mrf.mxu0
  %v180 = vadd.f32 0.0, %v179
  %181 = vmatmul.f32.gmra.mxu0 %v45
  %v182 = vpop.f32.mrf.mxu0
  %v183 = vadd.f32 0.0, %v182
  %184 = vmatmul.f32.gmra.mxu0 %v48
  %v185 = vpop.f32.mrf.mxu0
  %v186 = vadd.f32 0.0, %v185
  %187 = vmatmul.f32.gmra.mxu0 %v51
  %v188 = vpop.f32.mrf.mxu0
  %v189 = vadd.f32 0.0, %v188
  %190 = vmatmul.f32.gmra.mxu0 %v54
  %v191 = vpop.f32.mrf.mxu0
  %v192 = vadd.f32 0.0, %v191
  %193 = vmatmul.f32.gmra.mxu0 %v57
  %v194 = vpop.f32.mrf.mxu0
  %v195 = vadd.f32 0.0, %v194
  %196 = vmatmul.f32.gmra.mxu0 %v60
  %v197 = vpop.f32.mrf.mxu0
  %v198 = vadd.f32 0.0, %v197
  %199 = vmatmul.f32.gmra.mxu0 %v63
  %v200 = vpop.f32.mrf.mxu0
  %v201 = vadd.f32 0.0, %v200
  %202 = vmatmul.f32.gmra.mxu0 %v66
  %v203 = vpop.f32.mrf.mxu0
  %v204 = vadd.f32 0.0, %v203
  %205 = vmatmul.f32.gmra.mxu0 %v69
  %v206 = vpop.f32.mrf.mxu0
  %v207 = vadd.f32 0.0, %v206
  %208 = vmatmul.f32.gmra.mxu0 %v72
  %v209 = vpop.f32.mrf.mxu0
  %v210 = vadd.f32 0.0, %v209
  %211 = vmatmul.f32.gmra.mxu0 %v75
  %v212 = vpop.f32.mrf.mxu0
  %v213 = vadd.f32 0.0, %v212
  %214 = vmatmul.f32.gmra.mxu0 %v78
  %v215 = vpop.f32.mrf.mxu0
  %v216 = vadd.f32 0.0, %v215
  %217 = vmatmul.f32.gmra.mxu0 %v81
  %v218 = vpop.f32.mrf.mxu0
  %v219 = vadd.f32 0.0, %v218
  %220 = vmatmul.f32.gmra.mxu0 %v84
  %v221 = vpop.f32.mrf.mxu0
  %v222 = vadd.f32 0.0, %v221
  %223 = vdwg.mxu0
  %224 = vst.msk [vmem:[%s3] sm:$0xff] %vm37, %v108
  %225 = vst.msk [vmem:[%s3 + $0x8] sm:$0xff] %vm37, %v111
  %226 = vst.msk [vmem:[%s3 + $0x10] sm:$0xff] %vm37, %v114
  %227 = vst.msk [vmem:[%s3 + $0x18] sm:$0xff] %vm37, %v117
  %228 = vst.msk [vmem:[%s3 + $0x20] sm:$0xff] %vm37, %v120
  %229 = vst.msk [vmem:[%s3 + $0x28] sm:$0xff] %vm37, %v123
  %230 = vst.msk [vmem:[%s3 + $0x30] sm:$0xff] %vm37, %v126
  %231 = vst.msk [vmem:[%s3 + $0x38] sm:$0xff] %vm37, %v129
  %232 = vst.msk [vmem:[%s3 + $0x40] sm:$0xff] %vm37, %v132
  %233 = vst.msk [vmem:[%s3 + $0x48] sm:$0xff] %vm37, %v135
  %234 = vst.msk [vmem:[%s3 + $0x50] sm:$0xff] %vm37, %v138
  %235 = vst.msk [vmem:[%s3 + $0x58] sm:$0xff] %vm37, %v141
  %236 = vst.msk [vmem:[%s3 + $0x60] sm:$0xff] %vm37, %v144
  %237 = vst.msk [vmem:[%s3 + $0x68] sm:$0xff] %vm37, %v147
  %238 = vst.msk [vmem:[%s3 + $0x70] sm:$0xff] %vm37, %v150
  %239 = vst.msk [vmem:[%s3 + $0x78] sm:$0xff] %vm37, %v153
  %vm240 = vcmask 64512
  %241 = vst.msk [vmem:[%s4] sm:$0xff] %vm240, %v177
  %242 = vst.msk [vmem:[%s4 + $0x8] sm:$0xff] %vm240, %v180
  %243 = vst.msk [vmem:[%s4 + $0x10] sm:$0xff] %vm240, %v183
  %244 = vst.msk [vmem:[%s4 + $0x18] sm:$0xff] %vm240, %v186
  %245 = vst.msk [vmem:[%s4 + $0x20] sm:$0xff] %vm240, %v189
  %246 = vst.msk [vmem:[%s4 + $0x28] sm:$0xff] %vm240, %v192
  %247 = vst.msk [vmem:[%s4 + $0x30] sm:$0xff] %vm240, %v195
  %248 = vst.msk [vmem:[%s4 + $0x38] sm:$0xff] %vm240, %v198
  %249 = vst.msk [vmem:[%s4 + $0x40] sm:$0xff] %vm240, %v201
  %250 = vst.msk [vmem:[%s4 + $0x48] sm:$0xff] %vm240, %v204
  %251 = vst.msk [vmem:[%s4 + $0x50] sm:$0xff] %vm240, %v207
  %252 = vst.msk [vmem:[%s4 + $0x58] sm:$0xff] %vm240, %v210
  %253 = vst.msk [vmem:[%s4 + $0x60] sm:$0xff] %vm240, %v213
  %254 = vst.msk [vmem:[%s4 + $0x68] sm:$0xff] %vm240, %v216
  %255 = vst.msk [vmem:[%s4 + $0x70] sm:$0xff] %vm240, %v219
  %256 = vst.msk [vmem:[%s4 + $0x78] sm:$0xff] %vm240, %v222
  %v257 = vsel %vm37, %v108, 0.0
  %v258 = vsel %vm37, %v111, 0.0
  %v259 = vadd.f32 %v257, %v258
  %v260 = vsel %vm37, %v114, 0.0
  %v261 = vadd.f32 %v259, %v260
  %v262 = vsel %vm37, %v117, 0.0
  %v263 = vadd.f32 %v261, %v262
  %v264 = vsel %vm37, %v120, 0.0
  %v265 = vadd.f32 %v263, %v264
  %v266 = vsel %vm37, %v123, 0.0
  %v267 = vadd.f32 %v265, %v266
  %v268 = vsel %vm37, %v126, 0.0
  %v269 = vadd.f32 %v267, %v268
  %v270 = vsel %vm37, %v129, 0.0
  %v271 = vadd.f32 %v269, %v270
  %v272 = vsel %vm37, %v132, 0.0
  %v273 = vadd.f32 %v271, %v272
  %v274 = vsel %vm37, %v135, 0.0
  %v275 = vadd.f32 %v273, %v274
  %v276 = vsel %vm37, %v138, 0.0
  %v277 = vadd.f32 %v275, %v276
  %v278 = vsel %vm37, %v141, 0.0
  %v279 = vadd.f32 %v277, %v278
  %v280 = vsel %vm37, %v144, 0.0
  %v281 = vadd.f32 %v279, %v280
  %v282 = vsel %vm37, %v147, 0.0
  %v283 = vadd.f32 %v281, %v282
  %v284 = vsel %vm37, %v150, 0.0
  %v285 = vadd.f32 %v283, %v284
  %v286 = vsel %vm37, %v153, 0.0
  %v287 = vadd.f32 %v285, %v286
  %v288 = vrot.slane %v287, 4
  %v289 = vadd.f32 %v287, %v288
  %v290 = vrot.slane %v289, 2
  %v291 = vadd.f32 %v289, %v290
  %v292 = vrot.slane %v291, 1
  %v293 = vadd.f32 %v291, %v292
  %vm294 = vcmask 24576
  %295 = vst.msk [vmem:[%s5] sm:$0x1] %vm294, %v293
  %v296 = vmul.f32 %v108, %v108
  %v297 = vmul.f32 %v111, %v111
  %v298 = vmul.f32 %v114, %v114
  %v299 = vmul.f32 %v117, %v117
  %v300 = vmul.f32 %v120, %v120
  %v301 = vmul.f32 %v123, %v123
  %v302 = vmul.f32 %v126, %v126
  %v303 = vmul.f32 %v129, %v129
  %v304 = vmul.f32 %v132, %v132
  %v305 = vmul.f32 %v135, %v135
  %v306 = vmul.f32 %v138, %v138
  %v307 = vmul.f32 %v141, %v141
  %v308 = vmul.f32 %v144, %v144
  %v309 = vmul.f32 %v147, %v147
  %v310 = vmul.f32 %v150, %v150
  %v311 = vmul.f32 %v153, %v153
  %v312 = vsel %vm37, %v296, 0.0
  %v313 = vsel %vm37, %v297, 0.0
  %v314 = vadd.f32 %v312, %v313
  %v315 = vsel %vm37, %v298, 0.0
  %v316 = vadd.f32 %v314, %v315
  %v317 = vsel %vm37, %v299, 0.0
  %v318 = vadd.f32 %v316, %v317
  %v319 = vsel %vm37, %v300, 0.0
  %v320 = vadd.f32 %v318, %v319
  %v321 = vsel %vm37, %v301, 0.0
  %v322 = vadd.f32 %v320, %v321
  %v323 = vsel %vm37, %v302, 0.0
  %v324 = vadd.f32 %v322, %v323
  %v325 = vsel %vm37, %v303, 0.0
  %v326 = vadd.f32 %v324, %v325
  %v327 = vsel %vm37, %v304, 0.0
  %v328 = vadd.f32 %v326, %v327
  %v329 = vsel %vm37, %v305, 0.0
  %v330 = vadd.f32 %v328, %v329
  %v331 = vsel %vm37, %v306, 0.0
  %v332 = vadd.f32 %v330, %v331
  %v333 = vsel %vm37, %v307, 0.0
  %v334 = vadd.f32 %v332, %v333
  %v335 = vsel %vm37, %v308, 0.0
  %v336 = vadd.f32 %v334, %v335
  %v337 = vsel %vm37, %v309, 0.0
  %v338 = vadd.f32 %v336, %v337
  %v339 = vsel %vm37, %v310, 0.0
  %v340 = vadd.f32 %v338, %v339
  %v341 = vsel %vm37, %v311, 0.0
  %v342 = vadd.f32 %v340, %v341
  %v343 = vrot.slane %v342, 4
  %v344 = vadd.f32 %v342, %v343
  %v345 = vrot.slane %v344, 2
  %v346 = vadd.f32 %v344, %v345
  %v347 = vrot.slane %v346, 1
  %v348 = vadd.f32 %v346, %v347
  %349 = vst.msk [vmem:[%s6] sm:$0x1] %vm294, %v348
  %v350 = vsel %vm240, %v177, 0.0
  %v351 = vsel %vm240, %v180, 0.0
  %v352 = vadd.f32 %v350, %v351
  %v353 = vsel %vm240, %v183, 0.0
  %v354 = vadd.f32 %v352, %v353
  %v355 = vsel %vm240, %v186, 0.0
  %v356 = vadd.f32 %v354, %v355
  %v357 = vsel %vm240, %v189, 0.0
  %v358 = vadd.f32 %v356, %v357
  %v359 = vsel %vm240, %v192, 0.0
  %v360 = vadd.f32 %v358, %v359
  %v361 = vsel %vm240, %v195, 0.0
  %v362 = vadd.f32 %v360, %v361
  %v363 = vsel %vm240, %v198, 0.0
  %v364 = vadd.f32 %v362, %v363
  %v365 = vsel %vm240, %v201, 0.0
  %v366 = vadd.f32 %v364, %v365
  %v367 = vsel %vm240, %v204, 0.0
  %v368 = vadd.f32 %v366, %v367
  %v369 = vsel %vm240, %v207, 0.0
  %v370 = vadd.f32 %v368, %v369
  %v371 = vsel %vm240, %v210, 0.0
  %v372 = vadd.f32 %v370, %v371
  %v373 = vsel %vm240, %v213, 0.0
  %v374 = vadd.f32 %v372, %v373
  %v375 = vsel %vm240, %v216, 0.0
  %v376 = vadd.f32 %v374, %v375
  %v377 = vsel %vm240, %v219, 0.0
  %v378 = vadd.f32 %v376, %v377
  %v379 = vsel %vm240, %v222, 0.0
  %v380 = vadd.f32 %v378, %v379
  %v381 = vrot.slane %v380, 4
  %v382 = vadd.f32 %v380, %v381
  %v383 = vrot.slane %v382, 2
  %v384 = vadd.f32 %v382, %v383
  %v385 = vrot.slane %v384, 1
  %v386 = vadd.f32 %v384, %v385
  %vm387 = vcmask 57344
  %388 = vst.msk [vmem:[%s7] sm:$0x1] %vm387, %v386
  %v389 = vmul.f32 %v177, %v177
  %v390 = vmul.f32 %v180, %v180
  %v391 = vmul.f32 %v183, %v183
  %v392 = vmul.f32 %v186, %v186
  %v393 = vmul.f32 %v189, %v189
  %v394 = vmul.f32 %v192, %v192
  %v395 = vmul.f32 %v195, %v195
  %v396 = vmul.f32 %v198, %v198
  %v397 = vmul.f32 %v201, %v201
  %v398 = vmul.f32 %v204, %v204
  %v399 = vmul.f32 %v207, %v207
  %v400 = vmul.f32 %v210, %v210
  %v401 = vmul.f32 %v213, %v213
  %v402 = vmul.f32 %v216, %v216
  %v403 = vmul.f32 %v219, %v219
  %v404 = vmul.f32 %v222, %v222
  %v405 = vsel %vm240, %v389, 0.0
  %v406 = vsel %vm240, %v390, 0.0
  %v407 = vadd.f32 %v405, %v406
  %v408 = vsel %vm240, %v391, 0.0
  %v409 = vadd.f32 %v407, %v408
  %v410 = vsel %vm240, %v392, 0.0
  %v411 = vadd.f32 %v409, %v410
  %v412 = vsel %vm240, %v393, 0.0
  %v413 = vadd.f32 %v411, %v412
  %v414 = vsel %vm240, %v394, 0.0
  %v415 = vadd.f32 %v413, %v414
  %v416 = vsel %vm240, %v395, 0.0
  %v417 = vadd.f32 %v415, %v416
  %v418 = vsel %vm240, %v396, 0.0
  %v419 = vadd.f32 %v417, %v418
  %v420 = vsel %vm240, %v397, 0.0
  %v421 = vadd.f32 %v419, %v420
  %v422 = vsel %vm240, %v398, 0.0
  %v423 = vadd.f32 %v421, %v422
  %v424 = vsel %vm240, %v399, 0.0
  %v425 = vadd.f32 %v423, %v424
  %v426 = vsel %vm240, %v400, 0.0
  %v427 = vadd.f32 %v425, %v426
  %v428 = vsel %vm240, %v401, 0.0
  %v429 = vadd.f32 %v427, %v428
  %v430 = vsel %vm240, %v402, 0.0
  %v431 = vadd.f32 %v429, %v430
  %v432 = vsel %vm240, %v403, 0.0
  %v433 = vadd.f32 %v431, %v432
  %v434 = vsel %vm240, %v404, 0.0
  %v435 = vadd.f32 %v433, %v434
  %v436 = vrot.slane %v435, 4
  %v437 = vadd.f32 %v435, %v436
  %v438 = vrot.slane %v437, 2
  %v439 = vadd.f32 %v437, %v438
  %v440 = vrot.slane %v439, 1
  %v441 = vadd.f32 %v439, %v440
  %442 = vst.msk [vmem:[%s8] sm:$0x1] %vm387, %v441
  // Predicated region
  $region14: #{conv_block_forward.4} parent=0 // pred_check
    _
  $region15: #{conv_block_forward.4} parent=0 // pred_check_branch
    %444 = sbr.rel (0) target = $region17
  $region16: #{conv_block_forward.4} parent=0 // pred_region
    _
  $region17: #{conv_block_forward.4} parent=0 // pred_fallthru
    _
  // Predicated region
  $region18: #{conv_block_forward.4} parent=0 // pred_check
    _
  $region19: #{conv_block_forward.4} parent=0 // pred_check_branch
    %446 = sbr.rel (0) target = $region21
  $region20: #{conv_block_forward.4} parent=0 // pred_region
    _
  $region21: #{conv_block_forward.4} parent=0 // pred_fallthru
    _
  // Predicated region
  $region22: #{conv_block_forward.4} parent=0 // pred_check
    _
  $region23: #{conv_block_forward.4} parent=0 // pred_check_branch
    %448 = sbr.rel (0) target = $region25
  $region24: #{conv_block_forward.4} parent=0 // pred_region
    _
  $region25: #{conv_block_forward.4} parent=0 // pred_fallthru
    _
  // Predicated region
  $region26: #{conv_block_forward.4} parent=0 // pred_check
    _
  $region27: #{conv_block_forward.4} parent=0 // pred_check_branch
    %450 = sbr.rel (0) target = $region29
  $region28: #{conv_block_forward.4} parent=0 // pred_region
    _
  $region29: #{conv_block_forward.4} parent=0 // pred_fallthru
    _
  // Predicated region
  $region30: #{conv_block_forward.4} parent=0 // pred_check
    _
  $region31: #{conv_block_forward.4} parent=0 // pred_check_branch
    %452 = sbr.rel (0) target = $region33
  $region32: #{conv_block_forward.4} parent=0 // pred_region
    _
  $region33: #{conv_block_forward.4} parent=0 // pred_fallthru
    _
  // Predicated region
  $region34: #{conv_block_forward.4} parent=0 // pred_check
    _
  $region35: #{conv_block_forward.4} parent=0 // pred_check_branch
    %454 = sbr.rel (0) target = $region37
  $region36: #{conv_block_forward.4} parent=0 // pred_region
    _
  $region37: #{conv_block_forward.4} parent=0 // pred_fallthru
    _
  // Predicated region
  $region38: #{conv_block_forward.4} parent=0 // pred_check
    _
  $region39: #{conv_block_forward.4} parent=0 // pred_check_branch
    %456 = sbr.rel (0) target = $region41
  $region40: #{conv_block_forward.4} parent=0 // pred_region
    _
  $region41: #{conv_block_forward.4} parent=0 // pred_fallthru
    _
  // Predicated region
  $region42: #{conv_block_forward.4} parent=0 // pred_check
    _
  $region43: #{conv_block_forward.4} parent=0 // pred_check_branch
    %458 = sbr.rel (0) target = $region45
  $region44: #{conv_block_forward.4} parent=0 // pred_region
    _
  $region45: #{conv_block_forward.4} parent=0 // pred_fallthru
    _
  // Predicated region
  $region46: #{conv_block_forward.4} parent=0 // pred_check
    _
  $region47: #{conv_block_forward.4} parent=0 // pred_check_branch
    %460 = sbr.rel (0) target = $region49
  $region48: #{conv_block_forward.4} parent=0 // pred_region
    _
  $region49: #{conv_block_forward.4} parent=0 // pred_fallthru
    _
  // Predicated region
  $region50: #{conv_block_forward.4} parent=0 // pred_check
    _
  $region51: #{conv_block_forward.4} parent=0 // pred_check_branch
    %462 = sbr.rel (0) target = $region53
  $region52: #{conv_block_forward.4} parent=0 // pred_region
    _
  $region53: #{conv_block_forward.4} parent=0 // pred_fallthru
    _
  // Predicated region
  $region54: #{conv_block_forward.4} parent=0 // pred_check
    _
  $region55: #{conv_block_forward.4} parent=0 // pred_check_branch
    %464 = sbr.rel (0) target = $region57
  $region56: #{conv_block_forward.4} parent=0 // pred_region
    _
  $region57: #{conv_block_forward.4} parent=0 // pred_fallthru
    _
  // Predicated region
  $region58: #{conv_block_forward.4} parent=0 // pred_check
    _
  $region59: #{conv_block_forward.4} parent=0 // pred_check_branch
    %466 = sbr.rel (0) target = $region61
  $region60: #{conv_block_forward.4} parent=0 // pred_region
    _
  $region61: #{conv_block_forward.4} parent=0 // pred_fallthru
    _

// kernel: conv_block_forward.5
$region0: #{conv_block_forward.5}
  #allocation0 [shape = 'u32[]', space=smem, size = 0x4, offset = 0x4, fixed_abs, tag = 'smem constant byte address 0x4 - core index']
  #allocation1 [shape = 'u32[72,128]{1,0:T(1,128)}', space=vmem, size = 0x9000, scoped, tag = 'internal scratch']
  %s0 = inlined_call_operand.vmem [shape: f32[2,10,10,4], index: 0, kind: input, shape index: {}]
  %s1 = inlined_call_operand.vmem [shape: f32[1,4], index: 1, kind: input, shape index: {}]
  %s2 = inlined_call_operand.vmem [shape: f32[1,4], index: 2, kind: input, shape index: {}]
  %s3 = inlined_call_operand.vmem [shape: f32[3,3,4,6], index: 3, kind: input, shape index: {}]
  %s4 = inlined_call_operand.vmem [shape: f32[128,6], index: 4, kind: output, shape index: {0}]
  %s5 = inlined_call_operand.vmem [shape: f32[16,1,6], index: 5, kind: output, shape index: {1}]
  %s6 = inlined_call_operand.vmem [shape: f32[16,1,6], index: 6, kind: output, shape index: {2}]
  %7 = xla_tuple %s4, %s5, %s6
  %s8 = sld [smem:[#allocation0]]
  $region77: #{conv_block_forward.5} parent=0
    _
  %s10 = ssub.s32 1, %s8
  %s11 = scalar_select 0, %s10, %s8
  loop: start=0, step=1, limit=50
  $region2: #{conv_block_forward.5} parent=0 // loop_pre_header
    _
  $region3: #{conv_block_forward.5} parent=0 // loop_header
    %s13 = sphi 0, %s17
    %p14 = scmp.ge.s32.totalorder %s13, 50
    %s20 = sphi 0, %s39
    %s21 = sphi 0, %s35
    %s22 = sphi 0, %s31
    %s23 = sphi 0, %s20
    %s24 = sphi 0, %s21
    %s25 = sphi 0, %s22
    %s26 = sphi 0, %s23
    %s27 = sphi 0, %s24
    %s28 = sphi 0, %s25
    %s46 = sphi 0, %s48
    %s49 = sphi 0, %s46
    %s50 = sphi 0, %s49
    %s66 = sphi 0, %s50
    %s70 = sphi 0, %s70
    %s72 = sphi 0, %s70
    %s73 = sphi 0, %s72
    %s87 = sphi 0, %s73
    %s91 = sphi 0, %s91
    %s93 = sphi 0, %s91
    %s94 = sphi 0, %s93
    %s108 = sphi 0, %s94
    %s114 = sphi 0, %s116
    %s117 = sphi 0, %s114
    %s118 = sphi 0, %s117
    %s134 = sphi 0, %s118
    %s144 = sphi 0, %s146
    %s147 = sphi 0, %s144
    %s148 = sphi 0, %s147
    %s164 = sphi 0, %s148
    %s174 = sphi 0, %s176
    %s177 = sphi 0, %s174
    %s178 = sphi 0, %s177
    %s194 = sphi 0, %s178
    %s204 = sphi 0, %s206
    %s207 = sphi 0, %s204
    %s208 = sphi 0, %s207
    %s224 = sphi 0, %s208
  $region4: #{conv_block_forward.5} parent=0 // loop_header_branch
    %16 = sbr.rel (%p14) target = $region8
  $region5: #{conv_block_forward.5} parent=0 // loop_body
    %s18 = ssub.s32 %s13, 1
    %s19 = ssub.s32 %s13, 2
    %s29 = sadd.s32 1, %s22
    %p30 = scmp.ge.s32.totalorder %s29, 3
    %s31 = scalar_select %p30, 0, %s29
    %s32 = sadd.s32 1, %s21
    %s33 = scalar_select %p30, %s32, %s21
    %p34 = scmp.ge.s32.totalorder %s33, 8
    %s35 = scalar_select %p34, 0, %s33
    %s36 = sadd.s32 1, %s20
    %s37 = scalar_select %p34, %s36, %s20
    %p38 = scmp.ge.s32.totalorder %s37, 2
    %s39 = scalar_select %p38, 0, %s37
    %s40 = sadd.s32 %s21, %s22
    %s41 = sadd.s32 %s35, %s31
    %s42 = ssub.s32 %s20, %s39
    %s43 = ssub.s32 %s40, %s41
    %s44 = sor.u32 %s42, %s43
    %p45 = scmp.eq.s32.totalorder %s44, 0
    %s47 = sadd.s32 %s46, 1
    %s48 = scalar_select %p45, %s46, %s47
    %p51 = pneg %p45
    %p52 = scmp.eq.s32.totalorder %s13, 47
    %p53 = por %p51, %p52
    %p54 = scmp.ne.s32.totalorder %s46, %s49
    %p55 = scmp.eq.s32.totalorder %s13, 0
    %p56 = por %p54, %p55
    %p57 = scmp.ne.s32.totalorder %s46, %s49
    %p58 = scmp.eq.s32.totalorder %s18, 47
    %p59 = por %p57, %p58
    %p60 = scmp.ne.s32.totalorder %s49, %s50
    %p61 = scmp.eq.s32.totalorder %s18, 0
    %p62 = por %p60, %p61
    %p63 = scmp.ne.s32.totalorder %s49, %s50
    %p64 = scmp.eq.s32.totalorder %s19, 47
    %p65 = por %p63, %p64
    %p67 = scmp.ne.s32.totalorder %s50, %s66
    %p68 = scmp.eq.s32.totalorder %s19, 0
    %p69 = por %p67, %p68
    %s71 = sadd.s32 %s70, 1
    %p74 = scmp.eq.s32.totalorder %s13, 47
    %p75 = scmp.ne.s32.totalorder %s70, %s72
    %p76 = scmp.eq.s32.totalorder %s13, 0
    %p77 = por %p75, %p76
    %p78 = scmp.ne.s32.totalorder %s70, %s72
    %p79 = scmp.eq.s32.totalorder %s18, 47
    %p80 = por %p78, %p79
    %p81 = scmp.ne.s32.totalorder %s72, %s73
    %p82 = scmp.eq.s32.totalorder %s18, 0
    %p83 = por %p81, %p82
    %p84 = scmp.ne.s32.totalorder %s72, %s73
    %p85 = scmp.eq.s32.totalorder %s19, 47
    %p86 = por %p84, %p85
    %p88 = scmp.ne.s32.totalorder %s73, %s87
    %p89 = scmp.eq.s32.totalorder %s19, 0
    %p90 = por %p88, %p89
    %s92 = sadd.s32 %s91, 1
    %p95 = scmp.eq.s32.totalorder %s13, 47
    %p96 = scmp.ne.s32.totalorder %s91, %s93
    %p97 = scmp.eq.s32.totalorder %s13, 0
    %p98 = por %p96, %p97
    %p99 = scmp.ne.s32.totalorder %s91, %s93
    %p100 = scmp.eq.s32.totalorder %s18, 47
    %p101 = por %p99, %p100
    %p102 = scmp.ne.s32.totalorder %s93, %s94
    %p103 = scmp.eq.s32.totalorder %s18, 0
    %p104 = por %p102, %p103
    %p105 = scmp.ne.s32.totalorder %s93, %s94
    %p106 = scmp.eq.s32.totalorder %s19, 47
    %p107 = por %p105, %p106
    %p109 = scmp.ne.s32.totalorder %s94, %s108
    %p110 = scmp.eq.s32.totalorder %s19, 0
    %p111 = por %p109, %p110
    %s112 = ssub.s32 %s22, %s31
    %p113 = scmp.eq.s32.totalorder %s112, 0
    %s115 = sadd.s32 %s114, 1
    %s116 = scalar_select %p113, %s114, %s115
    %p119 = pneg %p113
    %p120 = scmp.eq.s32.totalorder %s13, 47
    %p121 = por %p119, %p120
    %p122 = scmp.ne.s32.totalorder %s114, %s117
    %p123 = scmp.eq.s32.totalorder %s13, 0
    %p124 = por %p122, %p123
    %p125 = scmp.ne.s32.totalorder %s114, %s117
    %p126 = scmp.eq.s32.totalorder %s18, 47
    %p127 = por %p125, %p126
    %p128 = scmp.ne.s32.totalorder %s117, %s118
    %p129 = scmp.eq.s32.totalorder %s18, 0
    %p130 = por %p128, %p129
    %p131 = scmp.ne.s32.totalorder %s117, %s118
    %p132 = scmp.eq.s32.totalorder %s19, 47
    %p133 = por %p131, %p132
    %p135 = scmp.ne.s32.totalorder %s118, %s134
    %p136 = scmp.eq.s32.totalorder %s19, 0
    %p137 = por %p135, %p136
    %s138 = smul.u32 %s20, 8
    %s139 = sadd.s32 %s138, %s21
    %s140 = smul.u32 %s39, 8
    %s141 = sadd.s32 %s140, %s35
    %s142 = ssub.s32 %s139, %s141
    %p143 = scmp.eq.s32.totalorder %s142, 0
    %s145 = sadd.s32 %s144, 1
    %s146 = scalar_select %p143, %s144, %s145
    %p149 = pneg %p143
    %p150 = scmp.eq.s32.totalorder %s13, 47
    %p151 = por %p149, %p150
    %p152 = scmp.ne.s32.totalorder %s144, %s147
    %p153 = scmp.eq.s32.totalorder %s13, 0
    %p154 = por %p152, %p153
    %p155 = scmp.ne.s32.totalorder %s144, %s147
    %p156 = scmp.eq.s32.totalorder %s18, 47
    %p157 = por %p155, %p156
    %p158 = scmp.ne.s32.totalorder %s147, %s148
    %p159 = scmp.eq.s32.totalorder %s18, 0
    %p160 = por %p158, %p159
    %p161 = scmp.ne.s32.totalorder %s147, %s148
    %p162 = scmp.eq.s32.totalorder %s19, 47
    %p163 = por %p161, %p162
    %p165 = scmp.ne.s32.totalorder %s148, %s164
    %p166 = scmp.eq.s32.totalorder %s19, 0
    %p167 = por %p165, %p166
    %s168 = smul.u32 %s20, 8
    %s169 = sadd.s32 %s168, %s21
    %s170 = smul.u32 %s39, 8
    %s171 = sadd.s32 %s170, %s35
    %s172 = ssub.s32 %s169, %s171
    %p173 = scmp.eq.s32.totalorder %s172, 0
    %s175 = sadd.s32 %s174, 1
    %s176 = scalar_select %p173, %s174, %s175
    %p179 = pneg %p173
    %p180 = scmp.eq.s32.totalorder %s13, 47
    %p181 = por %p179, %p180
    %p182 = scmp.ne.s32.totalorder %s174, %s177
    %p183 = scmp.eq.s32.totalorder %s13, 0
    %p184 = por %p182, %p183
    %p185 = scmp.ne.s32.totalorder %s174, %s177
    %p186 = scmp.eq.s32.totalorder %s18, 47
    %p187 = por %p185, %p186
    %p188 = scmp.ne.s32.totalorder %s177, %s178
    %p189 = scmp.eq.s32.totalorder %s18, 0
    %p190 = por %p188, %p189
    %p191 = scmp.ne.s32.totalorder %s177, %s178
    %p192 = scmp.eq.s32.totalorder %s19, 47
    %p193 = por %p191, %p192
    %p195 = scmp.ne.s32.totalorder %s178, %s194
    %p196 = scmp.eq.s32.totalorder %s19, 0
    %p197 = por %p195, %p196
    %s198 = smul.u32 %s20, 8
    %s199 = sadd.s32 %s198, %s21
    %s200 = smul.u32 %s39, 8
    %s201 = sadd.s32 %s200, %s35
    %s202 = ssub.s32 %s199, %s201
    %p203 = scmp.eq.s32.totalorder %s202, 0
    %s205 = sadd.s32 %s204, 1
    %s206 = scalar_select %p203, %s204, %s205
    %p209 = pneg %p203
    %p210 = scmp.eq.s32.totalorder %s13, 47
    %p211 = por %p209, %p210
    %p212 = scmp.ne.s32.totalorder %s204, %s207
    %p213 = scmp.eq.s32.totalorder %s13, 0
    %p214 = por %p212, %p213
    %p215 = scmp.ne.s32.totalorder %s204, %s207
    %p216 = scmp.eq.s32.totalorder %s18, 47
    %p217 = por %p215, %p216
    %p218 = scmp.ne.s32.totalorder %s207, %s208
    %p219 = scmp.eq.s32.totalorder %s18, 0
    %p220 = por %p218, %p219
    %p221 = scmp.ne.s32.totalorder %s207, %s208
    %p222 = scmp.eq.s32.totalorder %s19, 47
    %p223 = por %p221, %p222
    %p225 = scmp.ne.s32.totalorder %s208, %s224
    %p226 = scmp.eq.s32.totalorder %s19, 0
    %p227 = por %p225, %p226
    %p228 = scmp.le.s32.totalorder 1, %s13
    %p229 = scmp.lt.s32.totalorder %s13, 49
    %p230 = pnand %p228, %p229
    %p231 = pneg %p230
    // Predicated region
    $region9: #{conv_block_forward.5} parent=5 // pred_check
      _
    $region10: #{conv_block_forward.5} parent=5 // pred_check_branch
      %233 = sbr.rel (%p230) target = $region12
    $region11: #{conv_block_forward.5} parent=5 // pred_region
      %s234 = ssub.s32 %s13, 1
      // Predicated region
      $region13: #{conv_block_forward.5} parent=11 // pred_check
        %p235 = pneg %p83
      $region14: #{conv_block_forward.5} parent=11 // pred_check_branch
        %237 = sbr.rel (%p235) target = $region16
      $region15: #{conv_block_forward.5} parent=11 // pred_region
        _
      $region16: #{conv_block_forward.5} parent=11 // pred_fallthru
        _
      // Predicated region
      $region17: #{conv_block_forward.5} parent=11 // pred_check
        %p238 = pneg %p104
      $region18: #{conv_block_forward.5} parent=11 // pred_check_branch
        %240 = sbr.rel (%p238) target = $region20
      $region19: #{conv_block_forward.5} parent=11 // pred_region
        _
      $region20: #{conv_block_forward.5} parent=11 // pred_fallthru
        _
    $region12: #{conv_block_forward.5} parent=5 // pred_fallthru
      _
    %p241 = scmp.lt.s32.totalorder %s13, 48
    // Predicated region
    $region21: #{conv_block_forward.5} parent=5 // pred_check
      %p242 = pneg %p241
    $region22: #{conv_block_forward.5} parent=5 // pred_check_branch
      %244 = sbr.rel (%p242) target = $region24
    $region23: #{conv_block_forward.5} parent=5 // pred_region
      // Predicated region
      $region25: #{conv_block_forward.5} parent=23 // pred_check
        %p245 = pneg %p56
      $region26: #{conv_block_forward.5} parent=23 // pred_check_branch
        %247 = sbr.rel (%p245) target = $region28
      $region27: #{conv_block_forward.5} parent=23 // pred_region
        %s248 = sadd.s32 %s21, %s22
        %p249 = scmp.lt.s32.totalorder %s20, 1
        %s250 = scalar_select %p249, %s20, 1
        %p251 = scmp.lt.s32.totalorder %s248, 9
        %s252 = scalar_select %p251, %s248, 9
        %s253 = smul.addr %s252, 2
        %s254 = smul.addr %s250, 20
        %s255 = sadd.s32 %s253, %s254
        %s256 = smul.addr %s255, 8
        %s257 = scalar_lea.vmem %s0, %s256
        %s258 = sadd.s32 %s21, %s22
      $region28: #{conv_block_forward.5} parent=23 // pred_fallthru
        _
      // Predicated region
      $region29: #{conv_block_forward.5} parent=23 // pred_check
        %p259 = pneg %p124
      $region30: #{conv_block_forward.5} parent=23 // pred_check_branch
        %261 = sbr.rel (%p259) target = $region32
      $region31: #{conv_block_forward.5} parent=23 // pred_region
        %p262 = scmp.lt.s32.totalorder %s22, 2
        %s263 = scalar_select %p262, %s22, 2
        %s264 = smul.addr %s263, 3
        %s265 = smul.addr %s264, 4
        %s266 = scalar_lea.vmem %s3, %s265
      $region32: #{conv_block_forward.5} parent=23 // pred_fallthru
        _
    $region24: #{conv_block_forward.5} parent=5 // pred_fallthru
      _
    %p267 = scmp.le.s32.totalorder 1, %s13
    %p268 = scmp.lt.s32.totalorder %s13, 49
    %p269 = pnand %p267, %p268
    %p270 = pneg %p269
    // Predicated region
    $region33: #{conv_block_forward.5} parent=5 // pred_check
      _
    $region34: #{conv_block_forward.5} parent=5 // pred_check_branch
      %272 = sbr.rel (%p269) target = $region36
    $region35: #{conv_block_forward.5} parent=5 // pred_region
      %s273 = ssub.s32 %s13, 1
      %s274 = sadd.s32 %s24, %s25
      %p275 = scmp.lt.s32.totalorder %s23, 1
      %s276 = scalar_select %p275, %s23, 1
      %p277 = scmp.lt.s32.totalorder %s274, 9
      %s278 = scalar_select %p277, %s274, 9
      %s279 = smul.addr %s278, 2
      %s280 = smul.addr %s276, 20
      %s281 = sadd.s32 %s279, %s280
      %s282 = smul.addr %s281, 8
      %s283 = scalar_lea.vmem %s0, %s282
      %p284 = pneg %p62
      %p285 = pneg %p59
      %p286 = pneg %p83
      %p287 = pneg %p80
      %p288 = pneg %p104
      %p289 = pneg %p101
      %p290 = scmp.lt.s32.totalorder %s25, 2
      %s291 = scalar_select %p290, %s25, 2
      %s292 = smul.addr %s291, 3
      %s293 = smul.addr %s292, 4
      %s294 = scalar_lea.vmem %s3, %s293
      %p295 = pneg %p130
      %p296 = pneg %p127
      %p297 = pneg %p160
      %p298 = pneg %p157
      %s299 = smul.u32 %s23, 8
      %s300 = sadd.s32 %s299, %s24
      %p301 = scmp.lt.s32.totalorder %s300, 15
      %s302 = scalar_select %p301, %s300, 15
      %s303 = smul.addr %s302, 8
      %s304 = scalar_lea.vmem %s4, %s303
      %p305 = pneg %p190
      %p306 = pneg %p187
      %s307 = smul.u32 %s23, 8
      %s308 = sadd.s32 %s307, %s24
      %p309 = scmp.lt.s32.totalorder %s308, 15
      %s310 = scalar_select %p309, %s308, 15
      %s311 = scalar_lea.vmem %s5, %s310
      %p312 = pneg %p220
      %p313 = pneg %p217
      %s314 = smul.u32 %s23, 8
      %s315 = sadd.s32 %s314, %s24
      %p316 = scmp.lt.s32.totalorder %s315, 15
      %s317 = scalar_select %p316, %s315, 15
      %s318 = scalar_lea.vmem %s6, %s317
      %s319 = sadd.s32 %s24, %s25
      %p320 = scmp.lt.s32.totalorder %s23, 1
      %s321 = scalar_select %p320, %s23, 1
      %p322 = scmp.lt.s32.totalorder %s319, 9
      %s323 = scalar_select %p322, %s319, 9
      %s324 = smul.addr %s323, 2
      %s325 = smul.addr %s321, 20
      %s326 = sadd.s32 %s324, %s325
      %s327 = smul.addr %s326, 8
      %s328 = scalar_lea.vmem %s0, %s327
      %s329 = sadd.s32 %s24, %s25
      %p330 = scmp.lt.s32.totalorder %s25, 2
      %s331 = scalar_select %p330, %s25, 2
      %s332 = smul.addr %s331, 3
      %s333 = smul.addr %s332, 4
      %s334 = scalar_lea.vmem %s3, %s333
      %s335 = smul.u32 %s23, 8
      %s336 = sadd.s32 %s335, %s24
      %p337 = scmp.lt.s32.totalorder %s336, 15
      %s338 = scalar_select %p337, %s336, 15
      %s339 = smul.addr %s338, 8
      %s340 = scalar_lea.vmem %s4, %s339
      %s341 = smul.u32 %s23, 8
      %s342 = sadd.s32 %s341, %s24
      %s343 = smul.u32 %s23, 8
      %s344 = sadd.s32 %s343, %s24
      %p345 = scmp.lt.s32.totalorder %s344, 15
      %s346 = scalar_select %p345, %s344, 15
      %s347 = scalar_lea.vmem %s5, %s346
      %s348 = smul.u32 %s23, 8
      %s349 = sadd.s32 %s348, %s24
      %s350 = smul.u32 %s23, 8
      %s351 = sadd.s32 %s350, %s24
      %p352 = scmp.lt.s32.totalorder %s351, 15
      %s353 = scalar_select %p352, %s351, 15
      %s354 = scalar_lea.vmem %s6, %s353
      %s355 = smul.u32 %s23, 8
      %s356 = sadd.s32 %s355, %s24
      %p357 = scmp.eq.s32.totalorder %s25, 0
      // Predicated region
      $region37: #{conv_block_forward.5} parent=35 // pred_check
        %p358 = pneg %p357
      $region38: #{conv_block_forward.5} parent=35 // pred_check_branch
        %360 = sbr.rel (%p358) target = $region40
      $region39: #{conv_block_forward.5} parent=35 // pred_region
        %vm361 = vcmask 48128
        %362 = vst.msk [vmem:[%s340] sm:$0xff] %vm361, 0.0
      $region40: #{conv_block_forward.5} parent=35 // pred_fallthru
        _
      %s363 = sadd.s32 %s24, %s25
      %p364 = scmp.ge.s32.totalorder %s363, 1
      %p365 = scmp.lt.s32.totalorder %s363, 9
      %p366 = pnand %p364, %p365
      %p367 = pneg %p366
      // Predicated region
      $region41: #{conv_block_forward.5} parent=35 // pred_check
        _
      $region42: #{conv_block_forward.5} parent=35 // pred_check_branch
        %369 = sbr.rel (%p366) target = $region44
      $region43: #{conv_block_forward.5} parent=35 // pred_region
        %v370 = vlaneseq
        %v371 = vshrl.u32 %v370, 7
        %v372 = vld [vmem:[%s328] sm:$0xff]
        %v373 = vld [vmem:[%s1] sm:$0x1]
        %v375 = vperm.slane %v373, 0
        %v377 = vmul.f32 %v372, %v375
        %v378 = vld [vmem:[%s2] sm:$0x1]
        %v380 = vperm.slane %v378, 0
        %v382 = vadd.f32 %v377, %v380
        %v383 = vmax.f32 %v382, 0.0
        %vm384 = vcmp.ge.s32.totalorder %v371, 1
        %vm385 = vcmp.lt.s32.totalorder %v371, 9
        %vm386 = vmand %vm384, %vm385
        %v387 = vsel %vm386, %v383, 0.0
        %v388 = vld [vmem:[%s334] sm:$0xf]
        %v389 = vld [vmem:[%s328 + $0x1] sm:$0xff]
        %v390 = vmul.f32 %v389, %v375
        %v391 = vadd.f32 %v390, %v380
        %v392 = vmax.f32 %v391, 0.0
        %v393 = vadd.s32 %v371, 1
        %vm394 = vcmp.ge.s32.totalorder %v393, 1
        %vm395 = vcmp.lt.s32.totalorder %v393, 9
        %vm396 = vmand %vm394, %vm395
        %v397 = vsel %vm396, %v392, 0.0
        %s398 = scalar_lea.vmem %s334, 4
        %v399 = vld [vmem:[%s398] sm:$0xf]
        %vm400 = vcmask 31744
        %v402 = vsel %vm400, %v397, 0
        %vm404 = vcmask 1043456
        %v406 = vsel %vm404, %v399, 0
        %408 = vmatpush.msra.mxu0 0.0
        %409 = vmatpush.msra.mxu0 0.0
        %410 = vmatpush.msra.mxu0 0.0
        %411 = vmatpush.msra.mxu0 0.0
        %412 = vmatpush.msra.mxu0 0.0
        %413 = vmatpush.msra.mxu0 0.0
        %414 = vmatpush.msra.mxu0 0.0
        %415 = vmatpush.msra.mxu0 0.0
        %416 = vmatpush.msra.mxu0 0.0
        %417 = vmatpush.msra.mxu0 0.0
        %418 = vmatpush.msra.mxu0 0.0
        %419 = vmatpush.msra.mxu0 0.0
        %420 = vmatpush.msra.mxu0 0.0
        %421 = vmatpush.msra.mxu0 0.0
        %422 = vmatpush.msra.mxu0 0.0
        %423 = vmatpush.msra.mxu0 %v406
        %424 = vmatmul.f32.gmra.mxu0 %v402
        %v425 = vpop.f32.mrf.mxu0
        %v426 = vadd.f32 0.0, %v425
        %427 = vdwg.mxu0
        %v429 = vsel %vm400, %v387, 0
        %v432 = vsel %vm404, %v388, 0
        %434 = vmatpush.msra.mxu0 0.0
        %435 = vmatpush.msra.mxu0 0.0
        %436 = vmatpush.msra.mxu0 0.0
        %437 = vmatpush.msra.mxu0 0.0
        %438 = vmatpush.msra.mxu0 0.0
        %439 = vmatpush.msra.mxu0 0.0
        %440 = vmatpush.msra.mxu0 0.0
        %441 = vmatpush.msra.mxu0 0.0
        %442 = vmatpush.msra.mxu0 0.0
        %443 = vmatpush.msra.mxu0 0.0
        %444 = vmatpush.msra.mxu0 0.0
        %445 = vmatpush.msra.mxu0 0.0
        %446 = vmatpush.msra.mxu0 0.0
        %447 = vmatpush.msra.mxu0 0.0
        %448 = vmatpush.msra.mxu0 0.0
        %449 = vmatpush.msra.mxu0 %v432
        %450 = vmatmul.f32.gmra.mxu0 %v429
        %v451 = vpop.f32.mrf.mxu0
        %v452 = vadd.f32 %v426, %v451
        %453 = vdwg.mxu0
        %v454 = vld [vmem:[%s328 + $0x2] sm:$0xff]
        %v455 = vmul.f32 %v454, %v375
        %v456 = vadd.f32 %v455, %v380
        %v457 = vmax.f32 %v456, 0.0
        %v458 = vadd.s32 %v371, 2
        %vm459 = vcmp.ge.s32.totalorder %v458, 1
        %vm460 = vcmp.lt.s32.totalorder %v458, 9
        %vm461 = vmand %vm459, %vm460
        %v462 = vsel %vm461, %v457, 0.0
        %s463 = scalar_lea.vmem %s334, 8
        %v464 = vld [vmem:[%s463] sm:$0xf]
        %v466 = vsel %vm400, %v462, 0
        %v469 = vsel %vm404, %v464, 0
        %471 = vmatpush.msra.mxu0 0.0
        %472 = vmatpush.msra.mxu0 0.0
        %473 = vmatpush.msra.mxu0 0.0
        %474 = vmatpush.msra.mxu0 0.0
        %475 = vmatpush.msra.mxu0 0.0
        %476 = vmatpush.msra.mxu0 0.0
        %477 = vmatpush.msra.mxu0 0.0
        %478 = vmatpush.msra.mxu0 0.0
        %479 = vmatpush.msra.mxu0 0.0
        %480 = vmatpush.msra.mxu0 0.0
        %481 = vmatpush.msra.mxu0 0.0
        %482 = vmatpush.msra.mxu0 0.0
        %483 = vmatpush.msra.mxu0 0.0
        %484 = vmatpush.msra.mxu0 0.0
        %485 = vmatpush.msra.mxu0 0.0
        %486 = vmatpush.msra.mxu0 %v469
        %487 = vmatmul.f32.gmra.mxu0 %v466
        %v488 = vpop.f32.mrf.mxu0
        %v489 = vadd.f32 0.0, %v488
        %490 = vdwg.mxu0
        %v491 = vadd.f32 %v452, %v489
        %v492 = vld [vmem:[%s340] sm:$0xff]
        %v493 = vadd.f32 %v492, %v491
        %vm494 = vcmask 48128
        %495 = vst.msk [vmem:[%s340] sm:$0xff] %vm494, %v493
      $region44: #{conv_block_forward.5} parent=35 // pred_fallthru
        _
      %p496 = scmp.eq.s32.totalorder %s25, 2
      // Predicated region
      $region45: #{conv_block_forward.5} parent=35 // pred_check
        %p497 = pneg %p496
      $region46: #{conv_block_forward.5} parent=35 // pred_check_branch
        %499 = sbr.rel (%p497) target = $region48
      $region47: #{conv_block_forward.5} parent=35 // pred_region
        %v500 = vld [vmem:[%s340] sm:$0xff]
        %vm501 = vcmask 48128
        %v502 = vsel %vm501, %v500, 0.0
        %v503 = vrot.slane %v502, 4
        %v504 = vadd.f32 %v502, %v503
        %v505 = vrot.slane %v504, 2
        %v506 = vadd.f32 %v504, %v505
        %v507 = vrot.slane %v506, 1
        %v508 = vadd.f32 %v506, %v507
        %vm509 = vcmask 40960
        %510 = vst.msk [vmem:[%s347] sm:$0x1] %vm509, %v508
        %v511 = vmul.f32 %v500, %v500
        %v512 = vsel %vm501, %v511, 0.0
        %v513 = vrot.slane %v512, 4
        %v514 = vadd.f32 %v512, %v513
        %v515 = vrot.slane %v514, 2
        %v516 = vadd.f32 %v514, %v515
        %v517 = vrot.slane %v516, 1
        %v518 = vadd.f32 %v516, %v517
        %519 = vst.msk [vmem:[%s354] sm:$0x1] %vm509, %v518
      $region48: #{conv_block_forward.5} parent=35 // pred_fallthru
        _
      %s520 = smul.u32 %s23, 8
      %s521 = sadd.s32 %s520, %s24
      %p522 = scmp.lt.s32.totalorder %s521, 15
      %s523 = scalar_select %p522, %s521, 15
      %s524 = smul.addr %s523, 8
      %s525 = scalar_lea.vmem %s4, %s524
      %s526 = smul.u32 %s23, 8
      %s527 = sadd.s32 %s526, %s24
      %p528 = scmp.lt.s32.totalorder %s527, 15
      %s529 = scalar_select %p528, %s527, 15
      %s530 = scalar_lea.vmem %s5, %s529
      %s531 = smul.u32 %s23, 8
      %s532 = sadd.s32 %s531, %s24
      %p533 = scmp.lt.s32.totalorder %s532, 15
      %s534 = scalar_select %p533, %s532, 15
      %s535 = scalar_lea.vmem %s6, %s534
      // Predicated region
      $region49: #{conv_block_forward.5} parent=35 // pred_check
        %p536 = pneg %p157
      $region50: #{conv_block_forward.5} parent=35 // pred_check_branch
        %538 = sbr.rel (%p536) target = $region52
      $region51: #{conv_block_forward.5} parent=35 // pred_region
        %s539 = smul.u32 %s23, 8
        %s540 = sadd.s32 %s539, %s24
      $region52: #{conv_block_forward.5} parent=35 // pred_fallthru
        _
      // Predicated region
      $region53: #{conv_block_forward.5} parent=35 // pred_check
        %p541 = pneg %p187
      $region54: #{conv_block_forward.5} parent=35 // pred_check_branch
        %543 = sbr.rel (%p541) target = $region56
      $region55: #{conv_block_forward.5} parent=35 // pred_region
        %s544 = smul.u32 %s23, 8
        %s545 = sadd.s32 %s544, %s24
      $region56: #{conv_block_forward.5} parent=35 // pred_fallthru
        _
      // Predicated region
      $region57: #{conv_block_forward.5} parent=35 // pred_check
        %p546 = pneg %p217
      $region58: #{conv_block_forward.5} parent=35 // pred_check_branch
        %548 = sbr.rel (%p546) target = $region60
      $region59: #{conv_block_forward.5} parent=35 // pred_region
        %s549 = smul.u32 %s23, 8
        %s550 = sadd.s32 %s549, %s24
      $region60: #{conv_block_forward.5} parent=35 // pred_fallthru
        _
    $region36: #{conv_block_forward.5} parent=5 // pred_fallthru
      _
    %p551 = scmp.le.s32.totalorder 2, %s13
    // Predicated region
    $region61: #{conv_block_forward.5} parent=5 // pred_check
      %p552 = pneg %p551
    $region62: #{conv_block_forward.5} parent=5 // pred_check_branch
      %554 = sbr.rel (%p552) target = $region64
    $region63: #{conv_block_forward.5} parent=5 // pred_region
      %s555 = ssub.s32 %s13, 2
      // Predicated region
      $region65: #{conv_block_forward.5} parent=63 // pred_check
        %p556 = pneg %p163
      $region66: #{conv_block_forward.5} parent=63 // pred_check_branch
        %558 = sbr.rel (%p556) target = $region68
      $region67: #{conv_block_forward.5} parent=63 // pred_region
        %s559 = smul.u32 %s26, 8
        %s560 = sadd.s32 %s559, %s27
        %p561 = scmp.lt.s32.totalorder %s560, 15
        %s562 = scalar_select %p561, %s560, 15
        %s563 = smul.addr %s562, 8
        %s564 = scalar_lea.vmem %s4, %s563
      $region68: #{conv_block_forward.5} parent=63 // pred_fallthru
        _
      // Predicated region
      $region69: #{conv_block_forward.5} parent=63 // pred_check
        %p565 = pneg %p193
      $region70: #{conv_block_forward.5} parent=63 // pred_check_branch
        %567 = sbr.rel (%p565) target = $region72
      $region71: #{conv_block_forward.5} parent=63 // pred_region
        %s568 = smul.u32 %s26, 8
        %s569 = sadd.s32 %s568, %s27
        %p570 = scmp.lt.s32.totalorder %s569, 15
        %s571 = scalar_select %p570, %s569, 15
        %s572 = scalar_lea.vmem %s5, %s571
      $region72: #{conv_block_forward.5} parent=63 // pred_fallthru
        _
      // Predicated region
      $region73: #{conv_block_forward.5} parent=63 // pred_check
        %p573 = pneg %p223
      $region74: #{conv_block_forward.5} parent=63 // pred_check_branch
        %575 = sbr.rel (%p573) target = $region76
      $region75: #{conv_block_forward.5} parent=63 // pred_region
        %s576 = smul.u32 %s26, 8
        %s577 = sadd.s32 %s576, %s27
        %p578 = scmp.lt.s32.totalorder %s577, 15
        %s579 = scalar_select %p578, %s577, 15
        %s580 = scalar_lea.vmem %s6, %s579
      $region76: #{conv_block_forward.5} parent=63 // pred_fallthru
        _
    $region64: #{conv_block_forward.5} parent=5 // pred_fallthru
      _
  $region6: #{conv_block_forward.5} parent=0 // loop_footer
    %s17 = sadd.s32 1, %s13
  $region7: #{conv_block_forward.5} parent=0 // loop_footer_branch
    %12 = sbr.rel target = $region3
  $region8: #{conv_block_forward.5} parent=0 // loop_exit
    _

// kernel: conv_block_forward.6
$region0: #{conv_block_forward.6}
  #allocation0 [shape = 'u32[]', space=smem, size = 0x4, offset = 0x4, fixed_abs, tag = 'smem constant byte address 0x4 - core index']
  #allocation1 [shape = 'u32[72,128]{1,0:T(1,128)}', space=vmem, size = 0x9000, scoped, tag = 'internal scratch']
  %s0 = inlined_call_operand.vmem [shape: f32[128,6], index: 0, kind: input, shape index: {}]
  %s1 = inlined_call_operand.vmem [shape: f32[1,6], index: 1, kind: input, shape index: {}]
  %s2 = inlined_call_operand.vmem [shape: f32[1,6], index: 2, kind: input, shape index: {}]
  %s3 = inlined_call_operand.vmem [shape: f32[6,8], index: 3, kind: input, shape index: {}]
  %s4 = inlined_call_operand.vmem [shape: f32[128,8], index: 4, kind: output, shape index: {0}]
  %s5 = inlined_call_operand.vmem [shape: f32[1,1,8], index: 5, kind: output, shape index: {1}]
  %s6 = inlined_call_operand.vmem [shape: f32[1,1,8], index: 6, kind: output, shape index: {2}]
  %7 = xla_tuple %s4, %s5, %s6
  %s8 = sld [smem:[#allocation0]]
  $region42: #{conv_block_forward.6} parent=0
    _
  %s10 = ssub.s32 1, %s8
  %s11 = scalar_select 0, %s10, %s8
  // Predicated region
  $region2: #{conv_block_forward.6} parent=0 // pred_check
    _
  $region3: #{conv_block_forward.6} parent=0 // pred_check_branch
    %13 = sbr.rel (0) target = $region5
  $region4: #{conv_block_forward.6} parent=0 // pred_region
    _
  $region5: #{conv_block_forward.6} parent=0 // pred_fallthru
    _
  // Predicated region
  $region6: #{conv_block_forward.6} parent=0 // pred_check
    _
  $region7: #{conv_block_forward.6} parent=0 // pred_check_branch
    %15 = sbr.rel (0) target = $region9
  $region8: #{conv_block_forward.6} parent=0 // pred_region
    _
  $region9: #{conv_block_forward.6} parent=0 // pred_fallthru
    _
  // Predicated region
  $region10: #{conv_block_forward.6} parent=0 // pred_check
    _
  $region11: #{conv_block_forward.6} parent=0 // pred_check_branch
    %17 = sbr.rel (0) target = $region13
  $region12: #{conv_block_forward.6} parent=0 // pred_region
    _
  $region13: #{conv_block_forward.6} parent=0 // pred_fallthru
    _
  // Predicated region
  $region14: #{conv_block_forward.6} parent=0 // pred_check
    _
  $region15: #{conv_block_forward.6} parent=0 // pred_check_branch
    %19 = sbr.rel (0) target = $region17
  $region16: #{conv_block_forward.6} parent=0 // pred_region
    _
  $region17: #{conv_block_forward.6} parent=0 // pred_fallthru
    _
  %v20 = vld [vmem:[%s0] sm:$0xff]
  %v21 = vld [vmem:[%s0 + $0x8] sm:$0xff]
  %v22 = vld [vmem:[%s0 + $0x10] sm:$0xff]
  %v23 = vld [vmem:[%s0 + $0x18] sm:$0xff]
  %v24 = vld [vmem:[%s0 + $0x20] sm:$0xff]
  %v25 = vld [vmem:[%s0 + $0x28] sm:$0xff]
  %v26 = vld [vmem:[%s0 + $0x30] sm:$0xff]
  %v27 = vld [vmem:[%s0 + $0x38] sm:$0xff]
  %v28 = vld [vmem:[%s0 + $0x40] sm:$0xff]
  %v29 = vld [vmem:[%s0 + $0x48] sm:$0xff]
  %v30 = vld [vmem:[%s0 + $0x50] sm:$0xff]
  %v31 = vld [vmem:[%s0 + $0x58] sm:$0xff]
  %v32 = vld [vmem:[%s0 + $0x60] sm:$0xff]
  %v33 = vld [vmem:[%s0 + $0x68] sm:$0xff]
  %v34 = vld [vmem:[%s0 + $0x70] sm:$0xff]
  %v35 = vld [vmem:[%s0 + $0x78] sm:$0xff]
  %v36 = vld [vmem:[%s1] sm:$0x1]
  %v38 = vperm.slane %v36, 0
  %v40 = vmul.f32 %v20, %v38
  %v41 = vmul.f32 %v21, %v38
  %v42 = vmul.f32 %v22, %v38
  %v43 = vmul.f32 %v23, %v38
  %v44 = vmul.f32 %v24, %v38
  %v45 = vmul.f32 %v25, %v38
  %v46 = vmul.f32 %v26, %v38
  %v47 = vmul.f32 %v27, %v38
  %v48 = vmul.f32 %v28, %v38
  %v49 = vmul.f32 %v29, %v38
  %v50 = vmul.f32 %v30, %v38
  %v51 = vmul.f32 %v31, %v38
  %v52 = vmul.f32 %v32, %v38
  %v53 = vmul.f32 %v33, %v38
  %v54 = vmul.f32 %v34, %v38
  %v55 = vmul.f32 %v35, %v38
  %v56 = vld [vmem:[%s2] sm:$0x1]
  %v58 = vperm.slane %v56, 0
  %v60 = vadd.f32 %v40, %v58
  %v61 = vadd.f32 %v41, %v58
  %v62 = vadd.f32 %v42, %v58
  %v63 = vadd.f32 %v43, %v58
  %v64 = vadd.f32 %v44, %v58
  %v65 = vadd.f32 %v45, %v58
  %v66 = vadd.f32 %v46, %v58
  %v67 = vadd.f32 %v47, %v58
  %v68 = vadd.f32 %v48, %v58
  %v69 = vadd.f32 %v49, %v58
  %v70 = vadd.f32 %v50, %v58
  %v71 = vadd.f32 %v51, %v58
  %v72 = vadd.f32 %v52, %v58
  %v73 = vadd.f32 %v53, %v58
  %v74 = vadd.f32 %v54, %v58
  %v75 = vadd.f32 %v55, %v58
  %v76 = vmax.f32 %v60, 0.0
  %v77 = vmax.f32 %v61, 0.0
  %v78 = vmax.f32 %v62, 0.0
  %v79 = vmax.f32 %v63, 0.0
  %v80 = vmax.f32 %v64, 0.0
  %v81 = vmax.f32 %v65, 0.0
  %v82 = vmax.f32 %v66, 0.0
  %v83 = vmax.f32 %v67, 0.0
  %v84 = vmax.f32 %v68, 0.0
  %v85 = vmax.f32 %v69, 0.0
  %v86 = vmax.f32 %v70, 0.0
  %v87 = vmax.f32 %v71, 0.0
  %v88 = vmax.f32 %v72, 0.0
  %v89 = vmax.f32 %v73, 0.0
  %v90 = vmax.f32 %v74, 0.0
  %v91 = vmax.f32 %v75, 0.0
  %v92 = vld [vmem:[%s3] sm:$0x3f]
  %vm93 = vcmask 48128
  %v95 = vsel %vm93, %v76, 0
  %v98 = vsel %vm93, %v77, 0
  %v101 = vsel %vm93, %v78, 0
  %v104 = vsel %vm93, %v79, 0
  %v107 = vsel %vm93, %v80, 0
  %v110 = vsel %vm93, %v81, 0
  %v113 = vsel %vm93, %v82, 0
  %v116 = vsel %vm93, %v83, 0
  %v119 = vsel %vm93, %v84, 0
  %v122 = vsel %vm93, %v85, 0
  %v125 = vsel %vm93, %v86, 0
  %v128 = vsel %vm93, %v87, 0
  %v131 = vsel %vm93, %v88, 0
  %v134 = vsel %vm93, %v89, 0
  %v137 = vsel %vm93, %v90, 0
  %v140 = vsel %vm93, %v91, 0
  %vm142 = vcmask 1045504
  %v144 = vsel %vm142, %v92, 0
  %146 = vmatpush.msra.mxu0 0.0
  %147 = vmatpush.msra.mxu0 0.0
  %148 = vmatpush.msra.mxu0 0.0
  %149 = vmatpush.msra.mxu0 0.0
  %150 = vmatpush.msra.mxu0 0.0
  %151 = vmatpush.msra.mxu0 0.0
  %152 = vmatpush.msra.mxu0 0.0
  %153 = vmatpush.msra.mxu0 0.0
  %154 = vmatpush.msra.mxu0 0.0
  %155 = vmatpush.msra.mxu0 0.0
  %156 = vmatpush.msra.mxu0 0.0
  %157 = vmatpush.msra.mxu0 0.0
  %158 = vmatpush.msra.mxu0 0.0
  %159 = vmatpush.msra.mxu0 0.0
  %160 = vmatpush.msra.mxu0 0.0
  %161 = vmatpush.msra.mxu0 %v144
  %162 = vmatmul.f32.gmra.mxu0 %v95
  %v163 = vpop.f32.mrf.mxu0
  %v164 = vadd.f32 0.0, %v163
  %165 = vmatmul.f32.gmra.mxu0 %v98
  %v166 = vpop.f32.mrf.mxu0
  %v167 = vadd.f32 0.0, %v166
  %168 = vmatmul.f32.gmra.mxu0 %v101
  %v169 = vpop.f32.mrf.mxu0
  %v170 = vadd.f32 0.0, %v169
  %171 = vmatmul.f32.gmra.mxu0 %v104
  %v172 = vpop.f32.mrf.mxu0
  %v173 = vadd.f32 0.0, %v172
  %174 = vmatmul.f32.gmra.mxu0 %v107
  %v175 = vpop.f32.mrf.mxu0
  %v176 = vadd.f32 0.0, %v175
  %177 = vmatmul.f32.gmra.mxu0 %v110
  %v178 = vpop.f32.mrf.mxu0
  %v179 = vadd.f32 0.0, %v178
  %180 = vmatmul.f32.gmra.mxu0 %v113
  %v181 = vpop.f32.mrf.mxu0
  %v182 = vadd.f32 0.0, %v181
  %183 = vmatmul.f32.gmra.mxu0 %v116
  %v184 = vpop.f32.mrf.mxu0
  %v185 = vadd.f32 0.0, %v184
  %186 = vmatmul.f32.gmra.mxu0 %v119
  %v187 = vpop.f32.mrf.mxu0
  %v188 = vadd.f32 0.0, %v187
  %189 = vmatmul.f32.gmra.mxu0 %v122
  %v190 = vpop.f32.mrf.mxu0
  %v191 = vadd.f32 0.0, %v190
  %192 = vmatmul.f32.gmra.mxu0 %v125
  %v193 = vpop.f32.mrf.mxu0
  %v194 = vadd.f32 0.0, %v193
  %195 = vmatmul.f32.gmra.mxu0 %v128
  %v196 = vpop.f32.mrf.mxu0
  %v197 = vadd.f32 0.0, %v196
  %198 = vmatmul.f32.gmra.mxu0 %v131
  %v199 = vpop.f32.mrf.mxu0
  %v200 = vadd.f32 0.0, %v199
  %201 = vmatmul.f32.gmra.mxu0 %v134
  %v202 = vpop.f32.mrf.mxu0
  %v203 = vadd.f32 0.0, %v202
  %204 = vmatmul.f32.gmra.mxu0 %v137
  %v205 = vpop.f32.mrf.mxu0
  %v206 = vadd.f32 0.0, %v205
  %207 = vmatmul.f32.gmra.mxu0 %v140
  %v208 = vpop.f32.mrf.mxu0
  %v209 = vadd.f32 0.0, %v208
  %210 = vdwg.mxu0
  %vm211 = vcmask 64512
  %212 = vst.msk [vmem:[%s4] sm:$0xff] %vm211, %v164
  %213 = vst.msk [vmem:[%s4 + $0x8] sm:$0xff] %vm211, %v167
  %214 = vst.msk [vmem:[%s4 + $0x10] sm:$0xff] %vm211, %v170
  %215 = vst.msk [vmem:[%s4 + $0x18] sm:$0xff] %vm211, %v173
  %216 = vst.msk [vmem:[%s4 + $0x20] sm:$0xff] %vm211, %v176
  %217 = vst.msk [vmem:[%s4 + $0x28] sm:$0xff] %vm211, %v179
  %218 = vst.msk [vmem:[%s4 + $0x30] sm:$0xff] %vm211, %v182
  %219 = vst.msk [vmem:[%s4 + $0x38] sm:$0xff] %vm211, %v185
  %220 = vst.msk [vmem:[%s4 + $0x40] sm:$0xff] %vm211, %v188
  %221 = vst.msk [vmem:[%s4 + $0x48] sm:$0xff] %vm211, %v191
  %222 = vst.msk [vmem:[%s4 + $0x50] sm:$0xff] %vm211, %v194
  %223 = vst.msk [vmem:[%s4 + $0x58] sm:$0xff] %vm211, %v197
  %224 = vst.msk [vmem:[%s4 + $0x60] sm:$0xff] %vm211, %v200
  %225 = vst.msk [vmem:[%s4 + $0x68] sm:$0xff] %vm211, %v203
  %226 = vst.msk [vmem:[%s4 + $0x70] sm:$0xff] %vm211, %v206
  %227 = vst.msk [vmem:[%s4 + $0x78] sm:$0xff] %vm211, %v209
  %v228 = vsel %vm211, %v164, 0.0
  %v229 = vsel %vm211, %v167, 0.0
  %v230 = vadd.f32 %v228, %v229
  %v231 = vsel %vm211, %v170, 0.0
  %v232 = vadd.f32 %v230, %v231
  %v233 = vsel %vm211, %v173, 0.0
  %v234 = vadd.f32 %v232, %v233
  %v235 = vsel %vm211, %v176, 0.0
  %v236 = vadd.f32 %v234, %v235
  %v237 = vsel %vm211, %v179, 0.0
  %v238 = vadd.f32 %v236, %v237
  %v239 = vsel %vm211, %v182, 0.0
  %v240 = vadd.f32 %v238, %v239
  %v241 = vsel %vm211, %v185, 0.0
  %v242 = vadd.f32 %v240, %v241
  %v243 = vsel %vm211, %v188, 0.0
  %v244 = vadd.f32 %v242, %v243
  %v245 = vsel %vm211, %v191, 0.0
  %v246 = vadd.f32 %v244, %v245
  %v247 = vsel %vm211, %v194, 0.0
  %v248 = vadd.f32 %v246, %v247
  %v249 = vsel %vm211, %v197, 0.0
  %v250 = vadd.f32 %v248, %v249
  %v251 = vsel %vm211, %v200, 0.0
  %v252 = vadd.f32 %v250, %v251
  %v253 = vsel %vm211, %v203, 0.0
  %v254 = vadd.f32 %v252, %v253
  %v255 = vsel %vm211, %v206, 0.0
  %v256 = vadd.f32 %v254, %v255
  %v257 = vsel %vm211, %v209, 0.0
  %v258 = vadd.f32 %v256, %v257
  %v259 = vrot.slane %v258, 4
  %v260 = vadd.f32 %v258, %v259
  %v261 = vrot.slane %v260, 2
  %v262 = vadd.f32 %v260, %v261
  %v263 = vrot.slane %v262, 1
  %v264 = vadd.f32 %v262, %v263
  %vm265 = vcmask 57344
  %266 = vst.msk [vmem:[%s5] sm:$0x1] %vm265, %v264
  %v267 = vmul.f32 %v164, %v164
  %v268 = vmul.f32 %v167, %v167
  %v269 = vmul.f32 %v170, %v170
  %v270 = vmul.f32 %v173, %v173
  %v271 = vmul.f32 %v176, %v176
  %v272 = vmul.f32 %v179, %v179
  %v273 = vmul.f32 %v182, %v182
  %v274 = vmul.f32 %v185, %v185
  %v275 = vmul.f32 %v188, %v188
  %v276 = vmul.f32 %v191, %v191
  %v277 = vmul.f32 %v194, %v194
  %v278 = vmul.f32 %v197, %v197
  %v279 = vmul.f32 %v200, %v200
  %v280 = vmul.f32 %v203, %v203
  %v281 = vmul.f32 %v206, %v206
  %v282 = vmul.f32 %v209, %v209
  %v283 = vsel %vm211, %v267, 0.0
  %v284 = vsel %vm211, %v268, 0.0
  %v285 = vadd.f32 %v283, %v284
  %v286 = vsel %vm211, %v269, 0.0
  %v287 = vadd.f32 %v285, %v286
  %v288 = vsel %vm211, %v270, 0.0
  %v289 = vadd.f32 %v287, %v288
  %v290 = vsel %vm211, %v271, 0.0
  %v291 = vadd.f32 %v289, %v290
  %v292 = vsel %vm211, %v272, 0.0
  %v293 = vadd.f32 %v291, %v292
  %v294 = vsel %vm211, %v273, 0.0
  %v295 = vadd.f32 %v293, %v294
  %v296 = vsel %vm211, %v274, 0.0
  %v297 = vadd.f32 %v295, %v296
  %v298 = vsel %vm211, %v275, 0.0
  %v299 = vadd.f32 %v297, %v298
  %v300 = vsel %vm211, %v276, 0.0
  %v301 = vadd.f32 %v299, %v300
  %v302 = vsel %vm211, %v277, 0.0
  %v303 = vadd.f32 %v301, %v302
  %v304 = vsel %vm211, %v278, 0.0
  %v305 = vadd.f32 %v303, %v304
  %v306 = vsel %vm211, %v279, 0.0
  %v307 = vadd.f32 %v305, %v306
  %v308 = vsel %vm211, %v280, 0.0
  %v309 = vadd.f32 %v307, %v308
  %v310 = vsel %vm211, %v281, 0.0
  %v311 = vadd.f32 %v309, %v310
  %v312 = vsel %vm211, %v282, 0.0
  %v313 = vadd.f32 %v311, %v312
  %v314 = vrot.slane %v313, 4
  %v315 = vadd.f32 %v313, %v314
  %v316 = vrot.slane %v315, 2
  %v317 = vadd.f32 %v315, %v316
  %v318 = vrot.slane %v317, 1
  %v319 = vadd.f32 %v317, %v318
  %320 = vst.msk [vmem:[%s6] sm:$0x1] %vm265, %v319
  // Predicated region
  $region18: #{conv_block_forward.6} parent=0 // pred_check
    _
  $region19: #{conv_block_forward.6} parent=0 // pred_check_branch
    %322 = sbr.rel (0) target = $region21
  $region20: #{conv_block_forward.6} parent=0 // pred_region
    _
  $region21: #{conv_block_forward.6} parent=0 // pred_fallthru
    _
  // Predicated region
  $region22: #{conv_block_forward.6} parent=0 // pred_check
    _
  $region23: #{conv_block_forward.6} parent=0 // pred_check_branch
    %324 = sbr.rel (0) target = $region25
  $region24: #{conv_block_forward.6} parent=0 // pred_region
    _
  $region25: #{conv_block_forward.6} parent=0 // pred_fallthru
    _
  // Predicated region
  $region26: #{conv_block_forward.6} parent=0 // pred_check
    _
  $region27: #{conv_block_forward.6} parent=0 // pred_check_branch
    %326 = sbr.rel (0) target = $region29
  $region28: #{conv_block_forward.6} parent=0 // pred_region
    _
  $region29: #{conv_block_forward.6} parent=0 // pred_fallthru
    _
  // Predicated region
  $region30: #{conv_block_forward.6} parent=0 // pred_check
    _
  $region31: #{conv_block_forward.6} parent=0 // pred_check_branch
    %328 = sbr.rel (0) target = $region33
  $region32: #{conv_block_forward.6} parent=0 // pred_region
    _
  $region33: #{conv_block_forward.6} parent=0 // pred_fallthru
    _
  // Predicated region
  $region34: #{conv_block_forward.6} parent=0 // pred_check
    _
  $region35: #{conv_block_forward.6} parent=0 // pred_check_branch
    %330 = sbr.rel (0) target = $region37
  $region36: #{conv_block_forward.6} parent=0 // pred_region
    _
  $region37: #{conv_block_forward.6} parent=0 // pred_fallthru
    _
  // Predicated region
  $region38: #{conv_block_forward.6} parent=0 // pred_check
    _
  $region39: #{conv_block_forward.6} parent=0 // pred_check_branch
    %332 = sbr.rel (0) target = $region41
  $region40: #{conv_block_forward.6} parent=0 // pred_region
    _
  $region41: #{conv_block_forward.6} parent=0 // pred_fallthru
    _

// kernel: conv_block_forward.7
$region0: #{conv_block_forward.7}
  #allocation0 [shape = 'u32[]', space=smem, size = 0x4, offset = 0x4, fixed_abs, tag = 'smem constant byte address 0x4 - core index']
  #allocation1 [shape = 'u32[72,128]{1,0:T(1,128)}', space=vmem, size = 0x9000, scoped, tag = 'internal scratch']
  %s0 = inlined_call_operand.vmem [shape: f32[128,8], index: 0, kind: input, shape index: {}]
  %s1 = inlined_call_operand.vmem [shape: f32[1,8], index: 1, kind: input, shape index: {}]
  %s2 = inlined_call_operand.vmem [shape: f32[1,8], index: 2, kind: input, shape index: {}]
  %s3 = inlined_call_operand.vmem [shape: f32[128,8], index: 3, kind: input, shape index: {}]
  %s4 = inlined_call_operand.vmem [shape: f32[1,8], index: 4, kind: input, shape index: {}]
  %s5 = inlined_call_operand.vmem [shape: f32[1,8], index: 5, kind: input, shape index: {}]
  %s6 = inlined_call_operand.vmem [shape: f32[128,8], index: 6, kind: output, shape index: {}]
  %s7 = sld [smem:[#allocation0]]
  $region34: #{conv_block_forward.7} parent=0
    _
  %s9 = ssub.s32 1, %s7
  %s10 = scalar_select 0, %s9, %s7
  // Predicated region
  $region2: #{conv_block_forward.7} parent=0 // pred_check
    _
  $region3: #{conv_block_forward.7} parent=0 // pred_check_branch
    %12 = sbr.rel (0) target = $region5
  $region4: #{conv_block_forward.7} parent=0 // pred_region
    _
  $region5: #{conv_block_forward.7} parent=0 // pred_fallthru
    _
  // Predicated region
  $region6: #{conv_block_forward.7} parent=0 // pred_check
    _
  $region7: #{conv_block_forward.7} parent=0 // pred_check_branch
    %14 = sbr.rel (0) target = $region9
  $region8: #{conv_block_forward.7} parent=0 // pred_region
    _
  $region9: #{conv_block_forward.7} parent=0 // pred_fallthru
    _
  // Predicated region
  $region10: #{conv_block_forward.7} parent=0 // pred_check
    _
  $region11: #{conv_block_forward.7} parent=0 // pred_check_branch
    %16 = sbr.rel (0) target = $region13
  $region12: #{conv_block_forward.7} parent=0 // pred_region
    _
  $region13: #{conv_block_forward.7} parent=0 // pred_fallthru
    _
  // Predicated region
  $region14: #{conv_block_forward.7} parent=0 // pred_check
    _
  $region15: #{conv_block_forward.7} parent=0 // pred_check_branch
    %18 = sbr.rel (0) target = $region17
  $region16: #{conv_block_forward.7} parent=0 // pred_region
    _
  $region17: #{conv_block_forward.7} parent=0 // pred_fallthru
    _
  // Predicated region
  $region18: #{conv_block_forward.7} parent=0 // pred_check
    _
  $region19: #{conv_block_forward.7} parent=0 // pred_check_branch
    %20 = sbr.rel (0) target = $region21
  $region20: #{conv_block_forward.7} parent=0 // pred_region
    _
  $region21: #{conv_block_forward.7} parent=0 // pred_fallthru
    _
  // Predicated region
  $region22: #{conv_block_forward.7} parent=0 // pred_check
    _
  $region23: #{conv_block_forward.7} parent=0 // pred_check_branch
    %22 = sbr.rel (0) target = $region25
  $region24: #{conv_block_forward.7} parent=0 // pred_region
    _
  $region25: #{conv_block_forward.7} parent=0 // pred_fallthru
    _
  %v23 = vld [vmem:[%s0] sm:$0xff]
  %v24 = vld [vmem:[%s0 + $0x8] sm:$0xff]
  %v25 = vld [vmem:[%s0 + $0x10] sm:$0xff]
  %v26 = vld [vmem:[%s0 + $0x18] sm:$0xff]
  %v27 = vld [vmem:[%s0 + $0x20] sm:$0xff]
  %v28 = vld [vmem:[%s0 + $0x28] sm:$0xff]
  %v29 = vld [vmem:[%s0 + $0x30] sm:$0xff]
  %v30 = vld [vmem:[%s0 + $0x38] sm:$0xff]
  %v31 = vld [vmem:[%s0 + $0x40] sm:$0xff]
  %v32 = vld [vmem:[%s0 + $0x48] sm:$0xff]
  %v33 = vld [vmem:[%s0 + $0x50] sm:$0xff]
  %v34 = vld [vmem:[%s0 + $0x58] sm:$0xff]
  %v35 = vld [vmem:[%s0 + $0x60] sm:$0xff]
  %v36 = vld [vmem:[%s0 + $0x68] sm:$0xff]
  %v37 = vld [vmem:[%s0 + $0x70] sm:$0xff]
  %v38 = vld [vmem:[%s0 + $0x78] sm:$0xff]
  %v39 = vld [vmem:[%s1] sm:$0x1]
  %v41 = vperm.slane %v39, 0
  %v43 = vmul.f32 %v23, %v41
  %v44 = vmul.f32 %v24, %v41
  %v45 = vmul.f32 %v25, %v41
  %v46 = vmul.f32 %v26, %v41
  %v47 = vmul.f32 %v27, %v41
  %v48 = vmul.f32 %v28, %v41
  %v49 = vmul.f32 %v29, %v41
  %v50 = vmul.f32 %v30, %v41
  %v51 = vmul.f32 %v31, %v41
  %v52 = vmul.f32 %v32, %v41
  %v53 = vmul.f32 %v33, %v41
  %v54 = vmul.f32 %v34, %v41
  %v55 = vmul.f32 %v35, %v41
  %v56 = vmul.f32 %v36, %v41
  %v57 = vmul.f32 %v37, %v41
  %v58 = vmul.f32 %v38, %v41
  %v59 = vld [vmem:[%s2] sm:$0x1]
  %v61 = vperm.slane %v59, 0
  %v63 = vadd.f32 %v43, %v61
  %v64 = vadd.f32 %v44, %v61
  %v65 = vadd.f32 %v45, %v61
  %v66 = vadd.f32 %v46, %v61
  %v67 = vadd.f32 %v47, %v61
  %v68 = vadd.f32 %v48, %v61
  %v69 = vadd.f32 %v49, %v61
  %v70 = vadd.f32 %v50, %v61
  %v71 = vadd.f32 %v51, %v61
  %v72 = vadd.f32 %v52, %v61
  %v73 = vadd.f32 %v53, %v61
  %v74 = vadd.f32 %v54, %v61
  %v75 = vadd.f32 %v55, %v61
  %v76 = vadd.f32 %v56, %v61
  %v77 = vadd.f32 %v57, %v61
  %v78 = vadd.f32 %v58, %v61
  %v79 = vld [vmem:[%s3] sm:$0xff]
  %v80 = vld [vmem:[%s3 + $0x8] sm:$0xff]
  %v81 = vld [vmem:[%s3 + $0x10] sm:$0xff]
  %v82 = vld [vmem:[%s3 + $0x18] sm:$0xff]
  %v83 = vld [vmem:[%s3 + $0x20] sm:$0xff]
  %v84 = vld [vmem:[%s3 + $0x28] sm:$0xff]
  %v85 = vld [vmem:[%s3 + $0x30] sm:$0xff]
  %v86 = vld [vmem:[%s3 + $0x38] sm:$0xff]
  %v87 = vld [vmem:[%s3 + $0x40] sm:$0xff]
  %v88 = vld [vmem:[%s3 + $0x48] sm:$0xff]
  %v89 = vld [vmem:[%s3 + $0x50] sm:$0xff]
  %v90 = vld [vmem:[%s3 + $0x58] sm:$0xff]
  %v91 = vld [vmem:[%s3 + $0x60] sm:$0xff]
  %v92 = vld [vmem:[%s3 + $0x68] sm:$0xff]
  %v93 = vld [vmem:[%s3 + $0x70] sm:$0xff]
  %v94 = vld [vmem:[%s3 + $0x78] sm:$0xff]
  %v95 = vld [vmem:[%s4] sm:$0x1]
  %v97 = vperm.slane %v95, 0
  %v99 = vmul.f32 %v79, %v97
  %v100 = vmul.f32 %v80, %v97
  %v101 = vmul.f32 %v81, %v97
  %v102 = vmul.f32 %v82, %v97
  %v103 = vmul.f32 %v83, %v97
  %v104 = vmul.f32 %v84, %v97
  %v105 = vmul.f32 %v85, %v97
  %v106 = vmul.f32 %v86, %v97
  %v107 = vmul.f32 %v87, %v97
  %v108 = vmul.f32 %v88, %v97
  %v109 = vmul.f32 %v89, %v97
  %v110 = vmul.f32 %v90, %v97
  %v111 = vmul.f32 %v91, %v97
  %v112 = vmul.f32 %v92, %v97
  %v113 = vmul.f32 %v93, %v97
  %v114 = vmul.f32 %v94, %v97
  %v115 = vadd.f32 %v63, %v99
  %v116 = vadd.f32 %v64, %v100
  %v117 = vadd.f32 %v65, %v101
  %v118 = vadd.f32 %v66, %v102
  %v119 = vadd.f32 %v67, %v103
  %v120 = vadd.f32 %v68, %v104
  %v121 = vadd.f32 %v69, %v105
  %v122 = vadd.f32 %v70, %v106
  %v123 = vadd.f32 %v71, %v107
  %v124 = vadd.f32 %v72, %v108
  %v125 = vadd.f32 %v73, %v109
  %v126 = vadd.f32 %v74, %v110
  %v127 = vadd.f32 %v75, %v111
  %v128 = vadd.f32 %v76, %v112
  %v129 = vadd.f32 %v77, %v113
  %v130 = vadd.f32 %v78, %v114
  %v131 = vld [vmem:[%s5] sm:$0x1]
  %v133 = vperm.slane %v131, 0
  %v135 = vadd.f32 %v115, %v133
  %v136 = vadd.f32 %v116, %v133
  %v137 = vadd.f32 %v117, %v133
  %v138 = vadd.f32 %v118, %v133
  %v139 = vadd.f32 %v119, %v133
  %v140 = vadd.f32 %v120, %v133
  %v141 = vadd.f32 %v121, %v133
  %v142 = vadd.f32 %v122, %v133
  %v143 = vadd.f32 %v123, %v133
  %v144 = vadd.f32 %v124, %v133
  %v145 = vadd.f32 %v125, %v133
  %v146 = vadd.f32 %v126, %v133
  %v147 = vadd.f32 %v127, %v133
  %v148 = vadd.f32 %v128, %v133
  %v149 = vadd.f32 %v129, %v133
  %v150 = vadd.f32 %v130, %v133
  %v151 = vmax.f32 %v135, 0.0
  %v152 = vmax.f32 %v136, 0.0
  %v153 = vmax.f32 %v137, 0.0
  %v154 = vmax.f32 %v138, 0.0
  %v155 = vmax.f32 %v139, 0.0
  %v156 = vmax.f32 %v140, 0.0
  %v157 = vmax.f32 %v141, 0.0
  %v158 = vmax.f32 %v142, 0.0
  %v159 = vmax.f32 %v143, 0.0
  %v160 = vmax.f32 %v144, 0.0
  %v161 = vmax.f32 %v145, 0.0
  %v162 = vmax.f32 %v146, 0.0
  %v163 = vmax.f32 %v147, 0.0
  %v164 = vmax.f32 %v148, 0.0
  %v165 = vmax.f32 %v149, 0.0
  %v166 = vmax.f32 %v150, 0.0
  %vm167 = vcmask 64512
  %168 = vst.msk [vmem:[%s6] sm:$0xff] %vm167, %v151
  %169 = vst.msk [vmem:[%s6 + $0x8] sm:$0xff] %vm167, %v152
  %170 = vst.msk [vmem:[%s6 + $0x10] sm:$0xff] %vm167, %v153
  %171 = vst.msk [vmem:[%s6 + $0x18] sm:$0xff] %vm167, %v154
  %172 = vst.msk [vmem:[%s6 + $0x20] sm:$0xff] %vm167, %v155
  %173 = vst.msk [vmem:[%s6 + $0x28] sm:$0xff] %vm167, %v156
  %174 = vst.msk [vmem:[%s6 + $0x30] sm:$0xff] %vm167, %v157
  %175 = vst.msk [vmem:[%s6 + $0x38] sm:$0xff] %vm167, %v158
  %176 = vst.msk [vmem:[%s6 + $0x40] sm:$0xff] %vm167, %v159
  %177 = vst.msk [vmem:[%s6 + $0x48] sm:$0xff] %vm167, %v160
  %178 = vst.msk [vmem:[%s6 + $0x50] sm:$0xff] %vm167, %v161
  %179 = vst.msk [vmem:[%s6 + $0x58] sm:$0xff] %vm167, %v162
  %180 = vst.msk [vmem:[%s6 + $0x60] sm:$0xff] %vm167, %v163
  %181 = vst.msk [vmem:[%s6 + $0x68] sm:$0xff] %vm167, %v164
  %182 = vst.msk [vmem:[%s6 + $0x70] sm:$0xff] %vm167, %v165
  %183 = vst.msk [vmem:[%s6 + $0x78] sm:$0xff] %vm167, %v166
  // Predicated region
  $region26: #{conv_block_forward.7} parent=0 // pred_check
    _
  $region27: #{conv_block_forward.7} parent=0 // pred_check_branch
    %185 = sbr.rel (0) target = $region29
  $region28: #{conv_block_forward.7} parent=0 // pred_region
    _
  $region29: #{conv_block_forward.7} parent=0 // pred_fallthru
    _
  // Predicated region
  $region30: #{conv_block_forward.7} parent=0 // pred_check
    _
  $region31: #{conv_block_forward.7} parent=0 // pred_check_branch
    %187 = sbr.rel (0) target = $region33
  $region32: #{conv_block_forward.7} parent=0 // pred_region
    _
  $region33: #{conv_block_forward.7} parent=0 // pred_fallthru
    _

</llo_original>
